<compile_context>
chip_gen: v7x
topology: tpu7x:2x2x1
jax: 0.10.0
libtpu: 0.0.40
codegen_flags: <defaults>
</compile_context>

<pallas_src>
import functools

import jax
import jax.numpy as jnp
from jax import lax
from jax.experimental import pallas as pl
from jax.experimental.pallas import tpu as pltpu

GP = 128   # per-gate lane padding (H <= 128)
AP = 128   # padded class lanes (A <= 128)
HP = 128   # padded hidden width (== GP)


def _fused_kernel(idx_ref, taps_ref, conv_b_ref, w_ih_ref, w_hh_ref, lstm_b_ref,
                  lin_w_ref, lin_b_ref, out_ref, *, K, L_out, V):
    """One batch tile per grid step: embed+conv (fused) -> ReLU -> LSTM -> linear -> logsoftmax."""
    TB, L = idx_ref.shape
    G = 4 * GP

    # ---- time-major one-hot over the padded vocab (exact in bf16) ----------
    # Transpose only the tiny index tile (f32 so the 2-D transpose lowers cleanly).
    idx_tm = idx_ref[...].astype(jnp.float32).T                         # (L, TB)
    iota_v = lax.broadcasted_iota(jnp.int32, (L, TB, V), 2).astype(jnp.float32)
    onehot = (idx_tm[:, :, None] == iota_v).astype(jnp.bfloat16)        # (L, TB, V)

    # ---- Embedding + Conv1d fused: K shifted one-hot matmuls, then ReLU ----
    # conv[t] = sum_k emb(x[t+k]) @ W_k  ==  sum_k onehot[t+k] @ taps[k]
    conv = None
    for k in range(K):
        oh_k = onehot[k:k + L_out].reshape(L_out * TB, V)               # leading-axis slice, TB%8==0 -> free
        f_k = jnp.dot(oh_k, taps_ref[k], preferred_element_type=jnp.float32)
        conv = f_k if conv is None else conv + f_k
    conv = jnp.maximum(conv + conv_b_ref[...], 0.0)                     # (L_out*TB, C) f32, time-major rows

    # ---- LSTM input projection hoisted out of the recurrence ---------------
    gx = (jnp.dot(conv.astype(jnp.bfloat16), w_ih_ref[...],
                  preferred_element_type=jnp.float32)
          + lstm_b_ref[...]).reshape(L_out, TB, G)                      # (L_out, TB, 4*GP) f32

    # ---- single-layer LSTM recurrence (only h @ W_hh on the serial path) ---
    # Gates are lane-aligned (one 128-lane block each); padded lanes stay 0.
    w_hh = w_hh_ref[...]                                                # (HP, G) bf16
    h = jnp.zeros((TB, HP), jnp.float32)
    c = jnp.zeros((TB, HP), jnp.float32)
    for t in range(L_out):                                              # static unroll
        gates = gx[t] + jnp.dot(h.astype(jnp.bfloat16), w_hh,
                                preferred_element_type=jnp.float32)     # (TB, G) f32
        sg = jax.nn.sigmoid(gates)                                      # one EUP pass covers i, f, o
        i = sg[:, 0 * GP:1 * GP]
        f = sg[:, 1 * GP:2 * GP]
        o = sg[:, 3 * GP:4 * GP]
        g = jnp.tanh(gates[:, 2 * GP:3 * GP])
        c = f * c + i * g
        h = o * jnp.tanh(c)

    # ---- Linear + LogSoftmax(dim=1), lane-dense (TB, AP) store -------------
    # Padded class lanes carry a -1e9 bias -> exp underflows to 0, max unaffected.
    logits = jnp.dot(h.astype(jnp.bfloat16), lin_w_ref[...],
                     preferred_element_type=jnp.float32) + lin_b_ref[...]   # (TB, AP)
    m = jnp.max(logits, axis=1, keepdims=True)
    shifted = logits - m
    lse = jnp.log(jnp.sum(jnp.exp(shifted), axis=1, keepdims=True))
    out_ref[...] = shifted - lse


def model_forward(x_idx, params, *, tb=None):
    """x_idx: (B, L, 1) int32 token indices in [0, 29)."""
    B, L, _ = x_idx.shape

    emb = params['embedding']                        # (V, E)
    V, E = emb.shape
    K, _, C = params['conv_w'].shape
    H = params['w_hh_t'].shape[0]
    A = params['lin_w_t'].shape[1]
    L_out = L - K + 1
    G = 4 * GP
    assert H <= HP and A <= AP

    # ---- host-side weight prep ---------------------------------------------
    V_pad = int(pl.cdiv(V, 8)) * 8
    emb_p = jnp.pad(emb, ((0, V_pad - V), (0, 0)))
    # Fused embedding+conv tap tables: taps[k] = emb_pad @ conv_w[k]  -> (K, V_pad, C)
    taps = jnp.einsum('ve,kec->kvc', emb_p, params['conv_w']).astype(jnp.bfloat16)

    def pad_gate_cols(w):     # (rows, 4H) -> (rows, 4*GP); gate g occupies lanes [g*GP, g*GP+H)
        rows = w.shape[0]
        out = jnp.zeros((rows, G), w.dtype)
        for g_ in range(4):
            out = out.at[:, g_ * GP:g_ * GP + H].set(w[:, g_ * H:(g_ + 1) * H])
        return out

    w_ih = pad_gate_cols(params['w_ih_t']).astype(jnp.bfloat16)                          # (C, G)
    w_hh = (jnp.zeros((HP, G), jnp.float32)
            .at[:H].set(pad_gate_cols(params['w_hh_t']))).astype(jnp.bfloat16)           # (HP, G)
    lstm_b = pad_gate_cols(params['lstm_b']).astype(jnp.float32)                          # (1, G)
    lin_w = (jnp.zeros((HP, AP), jnp.float32)
             .at[:H, :A].set(params['lin_w_t'])).astype(jnp.bfloat16)                     # (HP, AP)
    lin_b = jnp.full((1, AP), -1e9, jnp.float32).at[:, :A].set(params['lin_b'])           # (1, AP)

    # ---- batch tiling -------------------------------------------------------
    # Tile multiple of 8 (sublane), capped at 512 (VMEM-safe on v7x's 64 MiB).
    if tb is None:
        tb = max(8, min(512, int(pl.next_power_of_2(B))))
    tb = int(pl.cdiv(tb, 8)) * 8
    # Always >= 2 grid steps so the "parallel" batch axis can use both TCs (v7x megacore).
    n_tiles = max(int(pl.cdiv(B, tb)), 2)
    B_pad = n_tiles * tb

    idx = x_idx[..., 0].astype(jnp.int32)            # (B, L)
    if B_pad != B:
        idx = jnp.pad(idx, ((0, B_pad - B), (0, 0)))

    kernel = functools.partial(_fused_kernel, K=K, L_out=L_out, V=V_pad)
    out = pl.pallas_call(
        kernel,
        out_shape=jax.ShapeDtypeStruct((B_pad, AP), jnp.float32),
        grid_spec=pltpu.PrefetchScalarGridSpec(
            num_scalar_prefetch=0,
            grid=(n_tiles,),
            in_specs=[
                pl.BlockSpec((tb, L), lambda b: (b, 0)),              # token indices
                pl.BlockSpec((K, V_pad, C), lambda b: (0, 0, 0)),     # fused emb+conv taps (bf16)
                pl.BlockSpec((1, C), lambda b: (0, 0)),               # conv bias (f32)
                pl.BlockSpec((C, G), lambda b: (0, 0)),               # W_ih^T, gate-padded (bf16)
                pl.BlockSpec((HP, G), lambda b: (0, 0)),              # W_hh^T, gate-padded (bf16)
                pl.BlockSpec((1, G), lambda b: (0, 0)),               # b_ih + b_hh, gate-padded (f32)
                pl.BlockSpec((HP, AP), lambda b: (0, 0)),             # linear W^T, padded (bf16)
                pl.BlockSpec((1, AP), lambda b: (0, 0)),              # linear bias (+ -1e9 class mask)
            ],
            out_specs=pl.BlockSpec((tb, AP), lambda b: (b, 0)),
        ),
        compiler_params=pltpu.CompilerParams(
            dimension_semantics=("parallel",),                         # independent batch tiles
            vmem_limit_bytes=48 * 1024 * 1024),
    )(idx, taps, params['conv_b'], w_ih, w_hh, lstm_b, lin_w, lin_b)
    return out[:B, :A]                                                 # (B, A)


def init_params(key, *, vocab=29, E=64, C=32, H=10, A=5, K=3):
    ks = jax.random.split(key, 8)
    s = 0.1
    return dict(
        embedding=s * jax.random.normal(ks[0], (vocab, E), jnp.float32),
        conv_w=s * jax.random.normal(ks[1], (K, E, C), jnp.float32),
        conv_b=s * jax.random.normal(ks[2], (1, C), jnp.float32),
        w_ih_t=s * jax.random.normal(ks[3], (C, 4 * H), jnp.float32),
        w_hh_t=s * jax.random.normal(ks[4], (H, 4 * H), jnp.float32),
        lstm_b=s * jax.random.normal(ks[5], (1, 4 * H), jnp.float32),   # b_ih + b_hh folded
        lin_w_t=s * jax.random.normal(ks[6], (H, A), jnp.float32),
        lin_b=s * jax.random.normal(ks[7], (1, A), jnp.float32),
    )


def reference_forward(x_idx, p):
    """Pure-JAX f32 reference mirroring the PyTorch forward (for verification)."""
    emb = jnp.take(p['embedding'], x_idx[..., 0], axis=0)
    K = p['conv_w'].shape[0]
    L_out = emb.shape[1] - K + 1
    conv = sum(jnp.einsum('ble,ec->blc', emb[:, k:k + L_out, :], p['conv_w'][k])
               for k in range(K))
    conv = jax.nn.relu(conv + p['conv_b'][None])
    H = p['w_hh_t'].shape[0]
    B = emb.shape[0]
    h = jnp.zeros((B, H), jnp.float32)
    c = jnp.zeros((B, H), jnp.float32)
    for t in range(L_out):
        gates = conv[:, t, :] @ p['w_ih_t'] + h @ p['w_hh_t'] + p['lstm_b']
        i = jax.nn.sigmoid(gates[:, :H])
        f = jax.nn.sigmoid(gates[:, H:2 * H])
        g = jnp.tanh(gates[:, 2 * H:3 * H])
        o = jax.nn.sigmoid(gates[:, 3 * H:4 * H])
        c = f * c + i * g
        h = o * jnp.tanh(c)
    logits = h @ p['lin_w_t'] + p['lin_b']
    return jax.nn.log_softmax(logits, axis=1)


if __name__ == "__main__":
    key = jax.random.PRNGKey(0)
    kp, kx = jax.random.split(key)
    B, L = 2, 8
    params = init_params(kp)
    x_idx = jax.random.randint(kx, (B, L, 1), 0, 29, dtype=jnp.int32)

    out = model_forward(x_idx, params)
    out = jax.block_until_ready(out)

    ref = reference_forward(x_idx, params)
    assert out.shape == (B, 5), out.shape
    # bf16 MXU operands: tolerance loosened vs. the pure-f32 reference.
    max_err = float(jnp.max(jnp.abs(out - ref)))
    assert jnp.allclose(out, ref, atol=2e-2, rtol=2e-2), (max_err, out, ref)
    print("KERNEL_OK")
</pallas_src>

<mosaic_0001>
module attributes {stable_mosaic.version = 11 : i64} {
  func.func @_fused_kernel(%arg0: i32, %arg1: memref<8x8xi32, #tpu.memory_space<vmem>>, %arg2: memref<3x32x32xbf16, #tpu.memory_space<vmem>>, %arg3: memref<1x32xf32, #tpu.memory_space<vmem>>, %arg4: memref<32x512xbf16, #tpu.memory_space<vmem>>, %arg5: memref<128x512xbf16, #tpu.memory_space<vmem>>, %arg6: memref<1x512xf32, #tpu.memory_space<vmem>>, %arg7: memref<128x128xbf16, #tpu.memory_space<vmem>>, %arg8: memref<1x128xf32, #tpu.memory_space<vmem>>, %arg9: memref<8x128xf32, #tpu.memory_space<vmem>>) attributes {dimension_semantics = [#tpu.dimension_semantics<parallel>], iteration_bounds = array<i64: 2>, scalar_prefetch = 0 : i64, scratch_operands = 0 : i64, tpu.core_type = #tpu.core_type<tc>, window_params = [{transform_indices = @transform_0, window_bounds = array<i64: 8, 8>}, {pipeline_mode = #tpu.pipeline_mode<synchronous>, transform_indices = @transform_1, window_bounds = array<i64: 3, 32, 32>}, {pipeline_mode = #tpu.pipeline_mode<synchronous>, transform_indices = @transform_2, window_bounds = array<i64: 1, 32>}, {pipeline_mode = #tpu.pipeline_mode<synchronous>, transform_indices = @transform_3, window_bounds = array<i64: 32, 512>}, {pipeline_mode = #tpu.pipeline_mode<synchronous>, transform_indices = @transform_4, window_bounds = array<i64: 128, 512>}, {pipeline_mode = #tpu.pipeline_mode<synchronous>, transform_indices = @transform_5, window_bounds = array<i64: 1, 512>}, {pipeline_mode = #tpu.pipeline_mode<synchronous>, transform_indices = @transform_6, window_bounds = array<i64: 128, 128>}, {pipeline_mode = #tpu.pipeline_mode<synchronous>, transform_indices = @transform_7, window_bounds = array<i64: 1, 128>}, {transform_indices = @transform_8, window_bounds = array<i64: 8, 128>}]} {
    %c0 = arith.constant 0 : index
    %c0_0 = arith.constant 0 : index
    %0 = vector.load %arg1[%c0, %c0_0] : memref<8x8xi32, #tpu.memory_space<vmem>>, vector<8x8xi32>
    %1 = arith.sitofp %0 : vector<8x8xi32> to vector<8x8xf32>
    %2 = tpu.transpose %1, [1, 0] : vector<8x8xf32> -> vector<8x8xf32>
    %3 = tpu.iota {dimensions = array<i32: 2>} : vector<8x8x32xi32>
    %4 = arith.sitofp %3 : vector<8x8x32xi32> to vector<8x8x32xf32>
    %5 = vector.shape_cast %2 : vector<8x8xf32> to vector<8x8x1xf32>
    %6 = vector.broadcast %5 : vector<8x8x1xf32> to vector<8x8x32xf32>
    %7 = arith.cmpf oeq, %6, %4 : vector<8x8x32xf32>
    %8 = arith.extui %7 : vector<8x8x32xi1> to vector<8x8x32xi32>
    %9 = arith.sitofp %8 : vector<8x8x32xi32> to vector<8x8x32xf32>
    %10 = arith.truncf %9 : vector<8x8x32xf32> to vector<8x8x32xbf16>
    %11 = vector.extract_strided_slice %10 {offsets = [0, 0, 0], sizes = [6, 8, 32], strides = [1, 1, 1]} : vector<8x8x32xbf16> to vector<6x8x32xbf16>
    %12 = vector.shape_cast %11 : vector<6x8x32xbf16> to vector<48x32xbf16>
    %c0_1 = arith.constant 0 : index
    %c0_2 = arith.constant 0 : index
    %c0_3 = arith.constant 0 : index
    %13 = vector.load %arg2[%c0_1, %c0_2, %c0_3] : memref<3x32x32xbf16, #tpu.memory_space<vmem>>, vector<1x32x32xbf16>
    %14 = vector.shape_cast %13 : vector<1x32x32xbf16> to vector<32x32xbf16>
    %cst = arith.constant dense<0.000000e+00> : vector<48x32xf32>
    %15 = tpu.matmul %12, %14, %cst {dimension_numbers = #tpu.dot_dimension_numbers<[1], [0], [0], [1], [0, 0, 1, 1], [], []>} : vector<48x32xbf16>, vector<32x32xbf16>, vector<48x32xf32> -> vector<48x32xf32>
    %16 = vector.extract_strided_slice %10 {offsets = [1, 0, 0], sizes = [6, 8, 32], strides = [1, 1, 1]} : vector<8x8x32xbf16> to vector<6x8x32xbf16>
    %17 = vector.shape_cast %16 : vector<6x8x32xbf16> to vector<48x32xbf16>
    %c1 = arith.constant 1 : index
    %c0_4 = arith.constant 0 : index
    %c0_5 = arith.constant 0 : index
    %18 = vector.load %arg2[%c1, %c0_4, %c0_5] : memref<3x32x32xbf16, #tpu.memory_space<vmem>>, vector<1x32x32xbf16>
    %19 = vector.shape_cast %18 : vector<1x32x32xbf16> to vector<32x32xbf16>
    %cst_6 = arith.constant dense<0.000000e+00> : vector<48x32xf32>
    %20 = tpu.matmul %17, %19, %cst_6 {dimension_numbers = #tpu.dot_dimension_numbers<[1], [0], [0], [1], [0, 0, 1, 1], [], []>} : vector<48x32xbf16>, vector<32x32xbf16>, vector<48x32xf32> -> vector<48x32xf32>
    %21 = arith.addf %15, %20 : vector<48x32xf32>
    %22 = vector.extract_strided_slice %10 {offsets = [2, 0, 0], sizes = [6, 8, 32], strides = [1, 1, 1]} : vector<8x8x32xbf16> to vector<6x8x32xbf16>
    %23 = vector.shape_cast %22 : vector<6x8x32xbf16> to vector<48x32xbf16>
    %c2 = arith.constant 2 : index
    %c0_7 = arith.constant 0 : index
    %c0_8 = arith.constant 0 : index
    %24 = vector.load %arg2[%c2, %c0_7, %c0_8] : memref<3x32x32xbf16, #tpu.memory_space<vmem>>, vector<1x32x32xbf16>
    %25 = vector.shape_cast %24 : vector<1x32x32xbf16> to vector<32x32xbf16>
    %cst_9 = arith.constant dense<0.000000e+00> : vector<48x32xf32>
    %26 = tpu.matmul %23, %25, %cst_9 {dimension_numbers = #tpu.dot_dimension_numbers<[1], [0], [0], [1], [0, 0, 1, 1], [], []>} : vector<48x32xbf16>, vector<32x32xbf16>, vector<48x32xf32> -> vector<48x32xf32>
    %27 = arith.addf %21, %26 : vector<48x32xf32>
    %c0_10 = arith.constant 0 : index
    %c0_11 = arith.constant 0 : index
    %28 = vector.load %arg3[%c0_10, %c0_11] : memref<1x32xf32, #tpu.memory_space<vmem>>, vector<1x32xf32>
    %29 = vector.broadcast %28 : vector<1x32xf32> to vector<48x32xf32>
    %30 = arith.addf %27, %29 : vector<48x32xf32>
    %cst_12 = arith.constant 0.000000e+00 : f32
    %31 = vector.broadcast %cst_12 : f32 to vector<48x32xf32>
    %32 = arith.maximumf %30, %31 : vector<48x32xf32>
    %33 = arith.truncf %32 : vector<48x32xf32> to vector<48x32xbf16>
    %c0_13 = arith.constant 0 : index
    %c0_14 = arith.constant 0 : index
    %34 = vector.load %arg4[%c0_13, %c0_14] : memref<32x512xbf16, #tpu.memory_space<vmem>>, vector<32x512xbf16>
    %cst_15 = arith.constant dense<0.000000e+00> : vector<48x512xf32>
    %35 = tpu.matmul %33, %34, %cst_15 {dimension_numbers = #tpu.dot_dimension_numbers<[1], [0], [0], [1], [0, 0, 1, 1], [], []>} : vector<48x32xbf16>, vector<32x512xbf16>, vector<48x512xf32> -> vector<48x512xf32>
    %c0_16 = arith.constant 0 : index
    %c0_17 = arith.constant 0 : index
    %36 = vector.load %arg6[%c0_16, %c0_17] : memref<1x512xf32, #tpu.memory_space<vmem>>, vector<1x512xf32>
    %37 = vector.broadcast %36 : vector<1x512xf32> to vector<48x512xf32>
    %38 = arith.addf %35, %37 : vector<48x512xf32>
    %39 = vector.shape_cast %38 : vector<48x512xf32> to vector<6x8x512xf32>
    %c0_18 = arith.constant 0 : index
    %c0_19 = arith.constant 0 : index
    %40 = vector.load %arg5[%c0_18, %c0_19] : memref<128x512xbf16, #tpu.memory_space<vmem>>, vector<128x512xbf16>
    %cst_20 = arith.constant 0.000000e+00 : f32
    %41 = vector.broadcast %cst_20 : f32 to vector<8x128xf32>
    %cst_21 = arith.constant 0.000000e+00 : f32
    %42 = vector.broadcast %cst_21 : f32 to vector<8x128xf32>
    %43 = vector.extract_strided_slice %39 {offsets = [0, 0, 0], sizes = [1, 8, 512], strides = [1, 1, 1]} : vector<6x8x512xf32> to vector<1x8x512xf32>
    %44 = vector.shape_cast %43 : vector<1x8x512xf32> to vector<8x512xf32>
    %45 = arith.truncf %41 : vector<8x128xf32> to vector<8x128xbf16>
    %cst_22 = arith.constant dense<0.000000e+00> : vector<8x512xf32>
    %46 = tpu.matmul %45, %40, %cst_22 {dimension_numbers = #tpu.dot_dimension_numbers<[1], [0], [0], [1], [0, 0, 1, 1], [], []>} : vector<8x128xbf16>, vector<128x512xbf16>, vector<8x512xf32> -> vector<8x512xf32>
    %47 = arith.addf %44, %46 : vector<8x512xf32>
    %48 = arith.negf %47 : vector<8x512xf32>
    %49 = math.exp %48 : vector<8x512xf32>
    %cst_23 = arith.constant 1.000000e+00 : f32
    %50 = vector.broadcast %cst_23 : f32 to vector<8x512xf32>
    %51 = arith.addf %50, %49 : vector<8x512xf32>
    %52 = arith.divf %50, %51 : vector<8x512xf32>
    %53 = vector.extract_strided_slice %52 {offsets = [0, 0], sizes = [8, 128], strides = [1, 1]} : vector<8x512xf32> to vector<8x128xf32>
    %54 = vector.extract_strided_slice %52 {offsets = [0, 128], sizes = [8, 128], strides = [1, 1]} : vector<8x512xf32> to vector<8x128xf32>
    %55 = vector.extract_strided_slice %52 {offsets = [0, 384], sizes = [8, 128], strides = [1, 1]} : vector<8x512xf32> to vector<8x128xf32>
    %56 = vector.extract_strided_slice %47 {offsets = [0, 256], sizes = [8, 128], strides = [1, 1]} : vector<8x512xf32> to vector<8x128xf32>
    %57 = math.tanh %56 : vector<8x128xf32>
    %58 = arith.mulf %54, %42 : vector<8x128xf32>
    %59 = arith.mulf %53, %57 : vector<8x128xf32>
    %60 = arith.addf %58, %59 : vector<8x128xf32>
    %61 = math.tanh %60 : vector<8x128xf32>
    %62 = arith.mulf %55, %61 : vector<8x128xf32>
    %63 = vector.extract_strided_slice %39 {offsets = [1, 0, 0], sizes = [1, 8, 512], strides = [1, 1, 1]} : vector<6x8x512xf32> to vector<1x8x512xf32>
    %64 = vector.shape_cast %63 : vector<1x8x512xf32> to vector<8x512xf32>
    %65 = arith.truncf %62 : vector<8x128xf32> to vector<8x128xbf16>
    %cst_24 = arith.constant dense<0.000000e+00> : vector<8x512xf32>
    %66 = tpu.matmul %65, %40, %cst_24 {dimension_numbers = #tpu.dot_dimension_numbers<[1], [0], [0], [1], [0, 0, 1, 1], [], []>} : vector<8x128xbf16>, vector<128x512xbf16>, vector<8x512xf32> -> vector<8x512xf32>
    %67 = arith.addf %64, %66 : vector<8x512xf32>
    %68 = arith.negf %67 : vector<8x512xf32>
    %69 = math.exp %68 : vector<8x512xf32>
    %cst_25 = arith.constant 1.000000e+00 : f32
    %70 = vector.broadcast %cst_25 : f32 to vector<8x512xf32>
    %71 = arith.addf %70, %69 : vector<8x512xf32>
    %72 = arith.divf %70, %71 : vector<8x512xf32>
    %73 = vector.extract_strided_slice %72 {offsets = [0, 0], sizes = [8, 128], strides = [1, 1]} : vector<8x512xf32> to vector<8x128xf32>
    %74 = vector.extract_strided_slice %72 {offsets = [0, 128], sizes = [8, 128], strides = [1, 1]} : vector<8x512xf32> to vector<8x128xf32>
    %75 = vector.extract_strided_slice %72 {offsets = [0, 384], sizes = [8, 128], strides = [1, 1]} : vector<8x512xf32> to vector<8x128xf32>
    %76 = vector.extract_strided_slice %67 {offsets = [0, 256], sizes = [8, 128], strides = [1, 1]} : vector<8x512xf32> to vector<8x128xf32>
    %77 = math.tanh %76 : vector<8x128xf32>
    %78 = arith.mulf %74, %60 : vector<8x128xf32>
    %79 = arith.mulf %73, %77 : vector<8x128xf32>
    %80 = arith.addf %78, %79 : vector<8x128xf32>
    %81 = math.tanh %80 : vector<8x128xf32>
    %82 = arith.mulf %75, %81 : vector<8x128xf32>
    %83 = vector.extract_strided_slice %39 {offsets = [2, 0, 0], sizes = [1, 8, 512], strides = [1, 1, 1]} : vector<6x8x512xf32> to vector<1x8x512xf32>
    %84 = vector.shape_cast %83 : vector<1x8x512xf32> to vector<8x512xf32>
    %85 = arith.truncf %82 : vector<8x128xf32> to vector<8x128xbf16>
    %cst_26 = arith.constant dense<0.000000e+00> : vector<8x512xf32>
    %86 = tpu.matmul %85, %40, %cst_26 {dimension_numbers = #tpu.dot_dimension_numbers<[1], [0], [0], [1], [0, 0, 1, 1], [], []>} : vector<8x128xbf16>, vector<128x512xbf16>, vector<8x512xf32> -> vector<8x512xf32>
    %87 = arith.addf %84, %86 : vector<8x512xf32>
    %88 = arith.negf %87 : vector<8x512xf32>
    %89 = math.exp %88 : vector<8x512xf32>
    %cst_27 = arith.constant 1.000000e+00 : f32
    %90 = vector.broadcast %cst_27 : f32 to vector<8x512xf32>
    %91 = arith.addf %90, %89 : vector<8x512xf32>
    %92 = arith.divf %90, %91 : vector<8x512xf32>
    %93 = vector.extract_strided_slice %92 {offsets = [0, 0], sizes = [8, 128], strides = [1, 1]} : vector<8x512xf32> to vector<8x128xf32>
    %94 = vector.extract_strided_slice %92 {offsets = [0, 128], sizes = [8, 128], strides = [1, 1]} : vector<8x512xf32> to vector<8x128xf32>
    %95 = vector.extract_strided_slice %92 {offsets = [0, 384], sizes = [8, 128], strides = [1, 1]} : vector<8x512xf32> to vector<8x128xf32>
    %96 = vector.extract_strided_slice %87 {offsets = [0, 256], sizes = [8, 128], strides = [1, 1]} : vector<8x512xf32> to vector<8x128xf32>
    %97 = math.tanh %96 : vector<8x128xf32>
    %98 = arith.mulf %94, %80 : vector<8x128xf32>
    %99 = arith.mulf %93, %97 : vector<8x128xf32>
    %100 = arith.addf %98, %99 : vector<8x128xf32>
    %101 = math.tanh %100 : vector<8x128xf32>
    %102 = arith.mulf %95, %101 : vector<8x128xf32>
    %103 = vector.extract_strided_slice %39 {offsets = [3, 0, 0], sizes = [1, 8, 512], strides = [1, 1, 1]} : vector<6x8x512xf32> to vector<1x8x512xf32>
    %104 = vector.shape_cast %103 : vector<1x8x512xf32> to vector<8x512xf32>
    %105 = arith.truncf %102 : vector<8x128xf32> to vector<8x128xbf16>
    %cst_28 = arith.constant dense<0.000000e+00> : vector<8x512xf32>
    %106 = tpu.matmul %105, %40, %cst_28 {dimension_numbers = #tpu.dot_dimension_numbers<[1], [0], [0], [1], [0, 0, 1, 1], [], []>} : vector<8x128xbf16>, vector<128x512xbf16>, vector<8x512xf32> -> vector<8x512xf32>
    %107 = arith.addf %104, %106 : vector<8x512xf32>
    %108 = arith.negf %107 : vector<8x512xf32>
    %109 = math.exp %108 : vector<8x512xf32>
    %cst_29 = arith.constant 1.000000e+00 : f32
    %110 = vector.broadcast %cst_29 : f32 to vector<8x512xf32>
    %111 = arith.addf %110, %109 : vector<8x512xf32>
    %112 = arith.divf %110, %111 : vector<8x512xf32>
    %113 = vector.extract_strided_slice %112 {offsets = [0, 0], sizes = [8, 128], strides = [1, 1]} : vector<8x512xf32> to vector<8x128xf32>
    %114 = vector.extract_strided_slice %112 {offsets = [0, 128], sizes = [8, 128], strides = [1, 1]} : vector<8x512xf32> to vector<8x128xf32>
    %115 = vector.extract_strided_slice %112 {offsets = [0, 384], sizes = [8, 128], strides = [1, 1]} : vector<8x512xf32> to vector<8x128xf32>
    %116 = vector.extract_strided_slice %107 {offsets = [0, 256], sizes = [8, 128], strides = [1, 1]} : vector<8x512xf32> to vector<8x128xf32>
    %117 = math.tanh %116 : vector<8x128xf32>
    %118 = arith.mulf %114, %100 : vector<8x128xf32>
    %119 = arith.mulf %113, %117 : vector<8x128xf32>
    %120 = arith.addf %118, %119 : vector<8x128xf32>
    %121 = math.tanh %120 : vector<8x128xf32>
    %122 = arith.mulf %115, %121 : vector<8x128xf32>
    %123 = vector.extract_strided_slice %39 {offsets = [4, 0, 0], sizes = [1, 8, 512], strides = [1, 1, 1]} : vector<6x8x512xf32> to vector<1x8x512xf32>
    %124 = vector.shape_cast %123 : vector<1x8x512xf32> to vector<8x512xf32>
    %125 = arith.truncf %122 : vector<8x128xf32> to vector<8x128xbf16>
    %cst_30 = arith.constant dense<0.000000e+00> : vector<8x512xf32>
    %126 = tpu.matmul %125, %40, %cst_30 {dimension_numbers = #tpu.dot_dimension_numbers<[1], [0], [0], [1], [0, 0, 1, 1], [], []>} : vector<8x128xbf16>, vector<128x512xbf16>, vector<8x512xf32> -> vector<8x512xf32>
    %127 = arith.addf %124, %126 : vector<8x512xf32>
    %128 = arith.negf %127 : vector<8x512xf32>
    %129 = math.exp %128 : vector<8x512xf32>
    %cst_31 = arith.constant 1.000000e+00 : f32
    %130 = vector.broadcast %cst_31 : f32 to vector<8x512xf32>
    %131 = arith.addf %130, %129 : vector<8x512xf32>
    %132 = arith.divf %130, %131 : vector<8x512xf32>
    %133 = vector.extract_strided_slice %132 {offsets = [0, 0], sizes = [8, 128], strides = [1, 1]} : vector<8x512xf32> to vector<8x128xf32>
    %134 = vector.extract_strided_slice %132 {offsets = [0, 128], sizes = [8, 128], strides = [1, 1]} : vector<8x512xf32> to vector<8x128xf32>
    %135 = vector.extract_strided_slice %132 {offsets = [0, 384], sizes = [8, 128], strides = [1, 1]} : vector<8x512xf32> to vector<8x128xf32>
    %136 = vector.extract_strided_slice %127 {offsets = [0, 256], sizes = [8, 128], strides = [1, 1]} : vector<8x512xf32> to vector<8x128xf32>
    %137 = math.tanh %136 : vector<8x128xf32>
    %138 = arith.mulf %134, %120 : vector<8x128xf32>
    %139 = arith.mulf %133, %137 : vector<8x128xf32>
    %140 = arith.addf %138, %139 : vector<8x128xf32>
    %141 = math.tanh %140 : vector<8x128xf32>
    %142 = arith.mulf %135, %141 : vector<8x128xf32>
    %143 = vector.extract_strided_slice %39 {offsets = [5, 0, 0], sizes = [1, 8, 512], strides = [1, 1, 1]} : vector<6x8x512xf32> to vector<1x8x512xf32>
    %144 = vector.shape_cast %143 : vector<1x8x512xf32> to vector<8x512xf32>
    %145 = arith.truncf %142 : vector<8x128xf32> to vector<8x128xbf16>
    %cst_32 = arith.constant dense<0.000000e+00> : vector<8x512xf32>
    %146 = tpu.matmul %145, %40, %cst_32 {dimension_numbers = #tpu.dot_dimension_numbers<[1], [0], [0], [1], [0, 0, 1, 1], [], []>} : vector<8x128xbf16>, vector<128x512xbf16>, vector<8x512xf32> -> vector<8x512xf32>
    %147 = arith.addf %144, %146 : vector<8x512xf32>
    %148 = arith.negf %147 : vector<8x512xf32>
    %149 = math.exp %148 : vector<8x512xf32>
    %cst_33 = arith.constant 1.000000e+00 : f32
    %150 = vector.broadcast %cst_33 : f32 to vector<8x512xf32>
    %151 = arith.addf %150, %149 : vector<8x512xf32>
    %152 = arith.divf %150, %151 : vector<8x512xf32>
    %153 = vector.extract_strided_slice %152 {offsets = [0, 0], sizes = [8, 128], strides = [1, 1]} : vector<8x512xf32> to vector<8x128xf32>
    %154 = vector.extract_strided_slice %152 {offsets = [0, 128], sizes = [8, 128], strides = [1, 1]} : vector<8x512xf32> to vector<8x128xf32>
    %155 = vector.extract_strided_slice %152 {offsets = [0, 384], sizes = [8, 128], strides = [1, 1]} : vector<8x512xf32> to vector<8x128xf32>
    %156 = vector.extract_strided_slice %147 {offsets = [0, 256], sizes = [8, 128], strides = [1, 1]} : vector<8x512xf32> to vector<8x128xf32>
    %157 = math.tanh %156 : vector<8x128xf32>
    %158 = arith.mulf %154, %140 : vector<8x128xf32>
    %159 = arith.mulf %153, %157 : vector<8x128xf32>
    %160 = arith.addf %158, %159 : vector<8x128xf32>
    %161 = math.tanh %160 : vector<8x128xf32>
    %162 = arith.mulf %155, %161 : vector<8x128xf32>
    %163 = arith.truncf %162 : vector<8x128xf32> to vector<8x128xbf16>
    %c0_34 = arith.constant 0 : index
    %c0_35 = arith.constant 0 : index
    %164 = vector.load %arg7[%c0_34, %c0_35] : memref<128x128xbf16, #tpu.memory_space<vmem>>, vector<128x128xbf16>
    %cst_36 = arith.constant dense<0.000000e+00> : vector<8x128xf32>
    %165 = tpu.matmul %163, %164, %cst_36 {dimension_numbers = #tpu.dot_dimension_numbers<[1], [0], [0], [1], [0, 0, 1, 1], [], []>} : vector<8x128xbf16>, vector<128x128xbf16>, vector<8x128xf32> -> vector<8x128xf32>
    %c0_37 = arith.constant 0 : index
    %c0_38 = arith.constant 0 : index
    %166 = vector.load %arg8[%c0_37, %c0_38] : memref<1x128xf32, #tpu.memory_space<vmem>>, vector<1x128xf32>
    %167 = vector.broadcast %166 : vector<1x128xf32> to vector<8x128xf32>
    %168 = arith.addf %165, %167 : vector<8x128xf32>
    %cst_39 = arith.constant dense<0xFF800000> : vector<8xf32>
    %169 = vector.multi_reduction <maximumf>, %168, %cst_39 [1] : vector<8x128xf32> to vector<8xf32>
    %170 = vector.shape_cast %169 : vector<8xf32> to vector<8x1xf32>
    %171 = vector.broadcast %170 : vector<8x1xf32> to vector<8x128xf32>
    %172 = arith.subf %168, %171 : vector<8x128xf32>
    %173 = math.exp %172 : vector<8x128xf32>
    %cst_40 = arith.constant dense<0.000000e+00> : vector<8xf32>
    %174 = vector.multi_reduction <add>, %173, %cst_40 [1] : vector<8x128xf32> to vector<8xf32>
    %175 = vector.shape_cast %174 : vector<8xf32> to vector<8x1xf32>
    %176 = math.log %175 : vector<8x1xf32>
    %177 = vector.broadcast %176 : vector<8x1xf32> to vector<8x128xf32>
    %178 = arith.subf %172, %177 : vector<8x128xf32>
    %c0_41 = arith.constant 0 : index
    %c0_42 = arith.constant 0 : index
    %179 = vector.load %arg9[%c0_41, %c0_42] : memref<8x128xf32, #tpu.memory_space<vmem>>, vector<8x128xf32>
    tpu.vector_store %arg9[%c0_41, %c0_42], %178 {strides = array<i32>} : memref<8x128xf32, #tpu.memory_space<vmem>>, vector<8x128xf32>,
    return
  }
  func.func @transform_0(%arg0: i32) -> (i32, i32) {
    %c0_i32 = arith.constant 0 : i32
    %c0_i32_0 = arith.constant 0 : i32
    return %arg0, %c0_i32 : i32, i32
  }
  func.func @transform_1(%arg0: i32) -> (i32, i32, i32) {
    %c0_i32 = arith.constant 0 : i32
    %c0_i32_0 = arith.constant 0 : i32
    %c0_i32_1 = arith.constant 0 : i32
    %c0_i32_2 = arith.constant 0 : i32
    return %c0_i32, %c0_i32_0, %c0_i32_1 : i32, i32, i32
  }
  func.func @transform_2(%arg0: i32) -> (i32, i32) {
    %c0_i32 = arith.constant 0 : i32
    %c0_i32_0 = arith.constant 0 : i32
    %c0_i32_1 = arith.constant 0 : i32
    return %c0_i32, %c0_i32_0 : i32, i32
  }
  func.func @transform_3(%arg0: i32) -> (i32, i32) {
    %c0_i32 = arith.constant 0 : i32
    %c0_i32_0 = arith.constant 0 : i32
    %c0_i32_1 = arith.constant 0 : i32
    return %c0_i32, %c0_i32_0 : i32, i32
  }
  func.func @transform_4(%arg0: i32) -> (i32, i32) {
    %c0_i32 = arith.constant 0 : i32
    %c0_i32_0 = arith.constant 0 : i32
    %c0_i32_1 = arith.constant 0 : i32
    return %c0_i32, %c0_i32_0 : i32, i32
  }
  func.func @transform_5(%arg0: i32) -> (i32, i32) {
    %c0_i32 = arith.constant 0 : i32
    %c0_i32_0 = arith.constant 0 : i32
    %c0_i32_1 = arith.constant 0 : i32
    return %c0_i32, %c0_i32_0 : i32, i32
  }
  func.func @transform_6(%arg0: i32) -> (i32, i32) {
    %c0_i32 = arith.constant 0 : i32
    %c0_i32_0 = arith.constant 0 : i32
    %c0_i32_1 = arith.constant 0 : i32
    return %c0_i32, %c0_i32_0 : i32, i32
  }
  func.func @transform_7(%arg0: i32) -> (i32, i32) {
    %c0_i32 = arith.constant 0 : i32
    %c0_i32_0 = arith.constant 0 : i32
    %c0_i32_1 = arith.constant 0 : i32
    return %c0_i32, %c0_i32_0 : i32, i32
  }
  func.func @transform_8(%arg0: i32) -> (i32, i32) {
    %c0_i32 = arith.constant 0 : i32
    %c0_i32_0 = arith.constant 0 : i32
    return %arg0, %c0_i32 : i32, i32
  }
}

</mosaic_0001>

<llo_original>
// kernel: tpu_custom_call.1
$region0: #{tpu_custom_call.1}
  #allocation0 [shape = 'u32[]', space=smem, size = 0x4, offset = 0x4, fixed_abs, tag = 'smem constant byte address 0x4 - core index']
  #allocation1 [shape = 'u32[144,128]{1,0:T(1,128)}', space=vmem, size = 0x12000, scoped, tag = 'internal scratch']
  %s0 = inlined_call_operand.vmem [shape: s32[16,8], index: 0, kind: input, shape index: {}]
  %s1 = inlined_call_operand.hbm [shape: bf16[3,32,32], index: 1, kind: input, shape index: {}]
  %s2 = inlined_call_operand.vmem [shape: f32[1,32], index: 2, kind: input, shape index: {}]
  %s3 = inlined_call_operand.hbm [shape: bf16[32,512], index: 3, kind: input, shape index: {}]
  %s4 = inlined_call_operand.hbm [shape: bf16[128,512], index: 4, kind: input, shape index: {}]
  %s5 = inlined_call_operand.vmem [shape: f32[1,512], index: 5, kind: input, shape index: {}]
  %s6 = inlined_call_operand.hbm [shape: bf16[128,128], index: 6, kind: input, shape index: {}]
  %s7 = inlined_call_operand.vmem [shape: f32[1,128], index: 7, kind: input, shape index: {}]
  %s8 = inlined_call_operand.hbm [shape: f32[16,128], index: 8, kind: output, shape index: {}]
  %s9 = sld [smem:[#allocation0]]
  $region81: #{tpu_custom_call.1} parent=0
    _
  %s11 = ssub.s32 1, %s9
  %s12 = scalar_select 0, %s11, %s9
  $region1: #{tpu_custom_call.1} parent=0
    #allocation2 [shape = 'u8[24576]{0}', space=vmem, size = 0x6000, scoped, tag = 'input window, operand 1, single buffered']
    #allocation3 [shape = 's32[2]{0}', space=sflag, size = 0x8, scoped, tag = 'scoped memory for tpu_custom_call.1']
    #allocation4 [shape = 's32[2]{0}', space=sflag, size = 0x8, scoped, tag = 'scoped memory for tpu_custom_call.1']
    #allocation5 [shape = 'u8[32768]{0}', space=vmem, size = 0x8000, scoped, tag = 'input window, operand 3, single buffered']
    #allocation6 [shape = 's32[1]{0}', space=sflag, size = 0x4, scoped, tag = 'scoped memory for tpu_custom_call.1']
    #allocation7 [shape = 'u8[131072]{0}', space=vmem, size = 0x20000, scoped, tag = 'input window, operand 4, single buffered']
    #allocation8 [shape = 'u8[32768]{0}', space=vmem, size = 0x8000, scoped, tag = 'input window, operand 6, single buffered']
    #allocation9 [shape = 's32[1]{0}', space=sflag, size = 0x4, scoped, tag = 'scoped memory for tpu_custom_call.1']
    #allocation10 [shape = 'u8[8192]{0}', space=vmem, size = 0x2000, scoped, tag = 'output window, operand 0']
    %13 = vsyncpa [#allocation3], 0
    %14 = vsyncpa [#allocation6], 0
    %15 = vsyncpa [#allocation9], 0
    %16 = vsyncpa [#allocation4], 0
    %s17 = scalar_lea.sflag [#allocation4], 1
    %18 = vsyncpa %s17, 0
    loop: start=0, step=1, limit=4
    $region2: #{tpu_custom_call.1} parent=1 // loop_pre_header
      _
    $region3: #{tpu_custom_call.1} parent=1 // loop_header
      %s20 = sphi 0, %s24
      %p21 = scmp.ge.s32.totalorder %s20, 4
      %s30 = sphi 0, %s32
      %s33 = sphi 0, %s30
      %s34 = sphi 0, %s33
      %s50 = sphi 0, %s34
      %s54 = sphi 0, %s54
      %s56 = sphi 0, %s54
      %s57 = sphi 0, %s56
      %s71 = sphi 0, %s57
      %s75 = sphi 0, %s75
      %s77 = sphi 0, %s75
      %s78 = sphi 0, %s77
      %s92 = sphi 0, %s78
      %s96 = sphi 0, %s96
      %s98 = sphi 0, %s96
      %s99 = sphi 0, %s98
      %s113 = sphi 0, %s99
      %s117 = sphi 0, %s117
      %s119 = sphi 0, %s117
      %s120 = sphi 0, %s119
      %s134 = sphi 0, %s120
      %s138 = sphi 0, %s138
      %s140 = sphi 0, %s138
      %s141 = sphi 0, %s140
      %s155 = sphi 0, %s141
      %s159 = sphi 0, %s159
      %s161 = sphi 0, %s159
      %s162 = sphi 0, %s161
      %s176 = sphi 0, %s162
      %s180 = sphi 0, %s180
      %s182 = sphi 0, %s180
      %s183 = sphi 0, %s182
      %s197 = sphi 0, %s183
      %s203 = sphi 0, %s205
      %s206 = sphi 0, %s203
      %s207 = sphi 0, %s206
      %s223 = sphi 0, %s207
    $region4: #{tpu_custom_call.1} parent=1 // loop_header_branch
      %23 = sbr.rel (%p21) target = $region8
    $region5: #{tpu_custom_call.1} parent=1 // loop_body
      %s25 = ssub.s32 %s20, 1
      %s26 = ssub.s32 %s20, 2
      %s27 = sadd.s32 %s20, 1
      %s28 = ssub.s32 %s20, %s27
      %p29 = scmp.eq.s32.totalorder %s28, 0
      %s31 = sadd.s32 %s30, 1
      %s32 = scalar_select %p29, %s30, %s31
      %p35 = pneg %p29
      %p36 = scmp.eq.s32.totalorder %s20, 1
      %p37 = por %p35, %p36
      %p38 = scmp.ne.s32.totalorder %s30, %s33
      %p39 = scmp.eq.s32.totalorder %s20, 0
      %p40 = por %p38, %p39
      %p41 = scmp.ne.s32.totalorder %s30, %s33
      %p42 = scmp.eq.s32.totalorder %s25, 1
      %p43 = por %p41, %p42
      %p44 = scmp.ne.s32.totalorder %s33, %s34
      %p45 = scmp.eq.s32.totalorder %s25, 0
      %p46 = por %p44, %p45
      %p47 = scmp.ne.s32.totalorder %s33, %s34
      %p48 = scmp.eq.s32.totalorder %s26, 1
      %p49 = por %p47, %p48
      %p51 = scmp.ne.s32.totalorder %s34, %s50
      %p52 = scmp.eq.s32.totalorder %s26, 0
      %p53 = por %p51, %p52
      %s55 = sadd.s32 %s54, 1
      %p58 = scmp.eq.s32.totalorder %s20, 1
      %p59 = scmp.ne.s32.totalorder %s54, %s56
      %p60 = scmp.eq.s32.totalorder %s20, 0
      %p61 = por %p59, %p60
      %p62 = scmp.ne.s32.totalorder %s54, %s56
      %p63 = scmp.eq.s32.totalorder %s25, 1
      %p64 = por %p62, %p63
      %p65 = scmp.ne.s32.totalorder %s56, %s57
      %p66 = scmp.eq.s32.totalorder %s25, 0
      %p67 = por %p65, %p66
      %p68 = scmp.ne.s32.totalorder %s56, %s57
      %p69 = scmp.eq.s32.totalorder %s26, 1
      %p70 = por %p68, %p69
      %p72 = scmp.ne.s32.totalorder %s57, %s71
      %p73 = scmp.eq.s32.totalorder %s26, 0
      %p74 = por %p72, %p73
      %s76 = sadd.s32 %s75, 1
      %p79 = scmp.eq.s32.totalorder %s20, 1
      %p80 = scmp.ne.s32.totalorder %s75, %s77
      %p81 = scmp.eq.s32.totalorder %s20, 0
      %p82 = por %p80, %p81
      %p83 = scmp.ne.s32.totalorder %s75, %s77
      %p84 = scmp.eq.s32.totalorder %s25, 1
      %p85 = por %p83, %p84
      %p86 = scmp.ne.s32.totalorder %s77, %s78
      %p87 = scmp.eq.s32.totalorder %s25, 0
      %p88 = por %p86, %p87
      %p89 = scmp.ne.s32.totalorder %s77, %s78
      %p90 = scmp.eq.s32.totalorder %s26, 1
      %p91 = por %p89, %p90
      %p93 = scmp.ne.s32.totalorder %s78, %s92
      %p94 = scmp.eq.s32.totalorder %s26, 0
      %p95 = por %p93, %p94
      %s97 = sadd.s32 %s96, 1
      %p100 = scmp.eq.s32.totalorder %s20, 1
      %p101 = scmp.ne.s32.totalorder %s96, %s98
      %p102 = scmp.eq.s32.totalorder %s20, 0
      %p103 = por %p101, %p102
      %p104 = scmp.ne.s32.totalorder %s96, %s98
      %p105 = scmp.eq.s32.totalorder %s25, 1
      %p106 = por %p104, %p105
      %p107 = scmp.ne.s32.totalorder %s98, %s99
      %p108 = scmp.eq.s32.totalorder %s25, 0
      %p109 = por %p107, %p108
      %p110 = scmp.ne.s32.totalorder %s98, %s99
      %p111 = scmp.eq.s32.totalorder %s26, 1
      %p112 = por %p110, %p111
      %p114 = scmp.ne.s32.totalorder %s99, %s113
      %p115 = scmp.eq.s32.totalorder %s26, 0
      %p116 = por %p114, %p115
      %s118 = sadd.s32 %s117, 1
      %p121 = scmp.eq.s32.totalorder %s20, 1
      %p122 = scmp.ne.s32.totalorder %s117, %s119
      %p123 = scmp.eq.s32.totalorder %s20, 0
      %p124 = por %p122, %p123
      %p125 = scmp.ne.s32.totalorder %s117, %s119
      %p126 = scmp.eq.s32.totalorder %s25, 1
      %p127 = por %p125, %p126
      %p128 = scmp.ne.s32.totalorder %s119, %s120
      %p129 = scmp.eq.s32.totalorder %s25, 0
      %p130 = por %p128, %p129
      %p131 = scmp.ne.s32.totalorder %s119, %s120
      %p132 = scmp.eq.s32.totalorder %s26, 1
      %p133 = por %p131, %p132
      %p135 = scmp.ne.s32.totalorder %s120, %s134
      %p136 = scmp.eq.s32.totalorder %s26, 0
      %p137 = por %p135, %p136
      %s139 = sadd.s32 %s138, 1
      %p142 = scmp.eq.s32.totalorder %s20, 1
      %p143 = scmp.ne.s32.totalorder %s138, %s140
      %p144 = scmp.eq.s32.totalorder %s20, 0
      %p145 = por %p143, %p144
      %p146 = scmp.ne.s32.totalorder %s138, %s140
      %p147 = scmp.eq.s32.totalorder %s25, 1
      %p148 = por %p146, %p147
      %p149 = scmp.ne.s32.totalorder %s140, %s141
      %p150 = scmp.eq.s32.totalorder %s25, 0
      %p151 = por %p149, %p150
      %p152 = scmp.ne.s32.totalorder %s140, %s141
      %p153 = scmp.eq.s32.totalorder %s26, 1
      %p154 = por %p152, %p153
      %p156 = scmp.ne.s32.totalorder %s141, %s155
      %p157 = scmp.eq.s32.totalorder %s26, 0
      %p158 = por %p156, %p157
      %s160 = sadd.s32 %s159, 1
      %p163 = scmp.eq.s32.totalorder %s20, 1
      %p164 = scmp.ne.s32.totalorder %s159, %s161
      %p165 = scmp.eq.s32.totalorder %s20, 0
      %p166 = por %p164, %p165
      %p167 = scmp.ne.s32.totalorder %s159, %s161
      %p168 = scmp.eq.s32.totalorder %s25, 1
      %p169 = por %p167, %p168
      %p170 = scmp.ne.s32.totalorder %s161, %s162
      %p171 = scmp.eq.s32.totalorder %s25, 0
      %p172 = por %p170, %p171
      %p173 = scmp.ne.s32.totalorder %s161, %s162
      %p174 = scmp.eq.s32.totalorder %s26, 1
      %p175 = por %p173, %p174
      %p177 = scmp.ne.s32.totalorder %s162, %s176
      %p178 = scmp.eq.s32.totalorder %s26, 0
      %p179 = por %p177, %p178
      %s181 = sadd.s32 %s180, 1
      %p184 = scmp.eq.s32.totalorder %s20, 1
      %p185 = scmp.ne.s32.totalorder %s180, %s182
      %p186 = scmp.eq.s32.totalorder %s20, 0
      %p187 = por %p185, %p186
      %p188 = scmp.ne.s32.totalorder %s180, %s182
      %p189 = scmp.eq.s32.totalorder %s25, 1
      %p190 = por %p188, %p189
      %p191 = scmp.ne.s32.totalorder %s182, %s183
      %p192 = scmp.eq.s32.totalorder %s25, 0
      %p193 = por %p191, %p192
      %p194 = scmp.ne.s32.totalorder %s182, %s183
      %p195 = scmp.eq.s32.totalorder %s26, 1
      %p196 = por %p194, %p195
      %p198 = scmp.ne.s32.totalorder %s183, %s197
      %p199 = scmp.eq.s32.totalorder %s26, 0
      %p200 = por %p198, %p199
      %s201 = ssub.s32 %s20, %s27
      %p202 = scmp.eq.s32.totalorder %s201, 0
      %s204 = sadd.s32 %s203, 1
      %s205 = scalar_select %p202, %s203, %s204
      %p208 = pneg %p202
      %p209 = scmp.eq.s32.totalorder %s20, 1
      %p210 = por %p208, %p209
      %p211 = scmp.ne.s32.totalorder %s203, %s206
      %p212 = scmp.eq.s32.totalorder %s20, 0
      %p213 = por %p211, %p212
      %p214 = scmp.ne.s32.totalorder %s203, %s206
      %p215 = scmp.eq.s32.totalorder %s25, 1
      %p216 = por %p214, %p215
      %p217 = scmp.ne.s32.totalorder %s206, %s207
      %p218 = scmp.eq.s32.totalorder %s25, 0
      %p219 = por %p217, %p218
      %p220 = scmp.ne.s32.totalorder %s206, %s207
      %p221 = scmp.eq.s32.totalorder %s26, 1
      %p222 = por %p220, %p221
      %p224 = scmp.ne.s32.totalorder %s207, %s223
      %p225 = scmp.eq.s32.totalorder %s26, 0
      %p226 = por %p224, %p225
      %p227 = scmp.le.s32.totalorder 1, %s20
      %p228 = scmp.lt.s32.totalorder %s20, 3
      %p229 = pnand %p227, %p228
      %p230 = pneg %p229
      // Predicated region
      $region9: #{tpu_custom_call.1} parent=5 // pred_check
        _
      $region10: #{tpu_custom_call.1} parent=5 // pred_check_branch
        %232 = sbr.rel (%p229) target = $region12
      $region11: #{tpu_custom_call.1} parent=5 // pred_region
        %s233 = ssub.s32 %s20, 1
        // Predicated region
        $region13: #{tpu_custom_call.1} parent=11 // pred_check
          %p234 = pneg %p67
        $region14: #{tpu_custom_call.1} parent=11 // pred_check_branch
          %236 = sbr.rel (%p234) target = $region16
        $region15: #{tpu_custom_call.1} parent=11 // pred_region
          %s238 = ssub.s32 768, 768
          %239 = vsyncadd [#allocation3], %s238
          %s240 = sshll.u32 [#allocation2], 4
          %s241 = int_to_ptr.vmem [resolvable:$true] %s240
          %246 = dma.hbm_to_vmem [thread:$0]  %s1, 768, %s241, [#allocation3], 64, 64, 4
        $region16: #{tpu_custom_call.1} parent=11 // pred_fallthru
          _
        // Predicated region
        $region17: #{tpu_custom_call.1} parent=11 // pred_check
          %p247 = pneg %p88
        $region18: #{tpu_custom_call.1} parent=11 // pred_check_branch
          %249 = sbr.rel (%p247) target = $region20
        $region19: #{tpu_custom_call.1} parent=11 // pred_region
          _
        $region20: #{tpu_custom_call.1} parent=11 // pred_fallthru
          _
        // Predicated region
        $region21: #{tpu_custom_call.1} parent=11 // pred_check
          %p250 = pneg %p109
        $region22: #{tpu_custom_call.1} parent=11 // pred_check_branch
          %252 = sbr.rel (%p250) target = $region24
        $region23: #{tpu_custom_call.1} parent=11 // pred_region
          %s254 = ssub.s32 1024, 1024
          %255 = vsyncadd [#allocation6], %s254
          %s256 = sshll.u32 [#allocation5], 4
          %s257 = int_to_ptr.vmem [resolvable:$true] %s256
          %262 = dma.hbm_to_vmem [thread:$0]  %s3, 1024, %s257, [#allocation6], 256, 256, 16
        $region24: #{tpu_custom_call.1} parent=11 // pred_fallthru
          _
        // Predicated region
        $region25: #{tpu_custom_call.1} parent=11 // pred_check
          %p263 = pneg %p130
        $region26: #{tpu_custom_call.1} parent=11 // pred_check_branch
          %265 = sbr.rel (%p263) target = $region28
        $region27: #{tpu_custom_call.1} parent=11 // pred_region
          %s267 = ssub.s32 4096, 4096
          %268 = vsyncadd [#allocation6], %s267
          %s269 = sshll.u32 [#allocation7], 4
          %s270 = int_to_ptr.vmem [resolvable:$true] %s269
          %275 = dma.hbm_to_vmem [thread:$0]  %s4, 4096, %s270, [#allocation6], 256, 256, 16
        $region28: #{tpu_custom_call.1} parent=11 // pred_fallthru
          _
        // Predicated region
        $region29: #{tpu_custom_call.1} parent=11 // pred_check
          %p276 = pneg %p151
        $region30: #{tpu_custom_call.1} parent=11 // pred_check_branch
          %278 = sbr.rel (%p276) target = $region32
        $region31: #{tpu_custom_call.1} parent=11 // pred_region
          _
        $region32: #{tpu_custom_call.1} parent=11 // pred_fallthru
          _
        // Predicated region
        $region33: #{tpu_custom_call.1} parent=11 // pred_check
          %p279 = pneg %p172
        $region34: #{tpu_custom_call.1} parent=11 // pred_check_branch
          %281 = sbr.rel (%p279) target = $region36
        $region35: #{tpu_custom_call.1} parent=11 // pred_region
          %s283 = ssub.s32 1024, 1024
          %284 = vsyncadd [#allocation9], %s283
          %s285 = sshll.u32 [#allocation8], 4
          %s286 = int_to_ptr.vmem [resolvable:$true] %s285
          %291 = dma.hbm_to_vmem [thread:$0]  %s6, 1024, %s286, [#allocation9], 64, 64, 4
        $region36: #{tpu_custom_call.1} parent=11 // pred_fallthru
          _
        // Predicated region
        $region37: #{tpu_custom_call.1} parent=11 // pred_check
          %p292 = pneg %p193
        $region38: #{tpu_custom_call.1} parent=11 // pred_check_branch
          %294 = sbr.rel (%p292) target = $region40
        $region39: #{tpu_custom_call.1} parent=11 // pred_region
          _
        $region40: #{tpu_custom_call.1} parent=11 // pred_fallthru
          _
      $region12: #{tpu_custom_call.1} parent=5 // pred_fallthru
        _
      %p295 = scmp.lt.s32.totalorder %s20, 2
      // Predicated region
      $region41: #{tpu_custom_call.1} parent=5 // pred_check
        %p296 = pneg %p295
      $region42: #{tpu_custom_call.1} parent=5 // pred_check_branch
        %298 = sbr.rel (%p296) target = $region44
      $region43: #{tpu_custom_call.1} parent=5 // pred_region
        // Predicated region
        $region45: #{tpu_custom_call.1} parent=43 // pred_check
          %p299 = pneg %p40
        $region46: #{tpu_custom_call.1} parent=43 // pred_check_branch
          %301 = sbr.rel (%p299) target = $region48
        $region47: #{tpu_custom_call.1} parent=43 // pred_region
          %p302 = scmp.lt.s32.totalorder %s20, 1
          %s303 = scalar_select %p302, %s20, 1
          %s304 = smul.addr %s303, 8
          %s305 = scalar_lea.vmem %s0, %s304
        $region48: #{tpu_custom_call.1} parent=43 // pred_fallthru
          _
      $region44: #{tpu_custom_call.1} parent=5 // pred_fallthru
        _
      %p306 = scmp.le.s32.totalorder 1, %s20
      %p307 = scmp.lt.s32.totalorder %s20, 3
      %p308 = pnand %p306, %p307
      %p309 = pneg %p308
      // Predicated region
      $region49: #{tpu_custom_call.1} parent=5 // pred_check
        _
      $region50: #{tpu_custom_call.1} parent=5 // pred_check_branch
        %311 = sbr.rel (%p308) target = $region52
      $region51: #{tpu_custom_call.1} parent=5 // pred_region
        %s312 = ssub.s32 %s20, 1
        // Predicated region
        $region53: #{tpu_custom_call.1} parent=51 // pred_check
          %p313 = pneg %p67
        $region54: #{tpu_custom_call.1} parent=51 // pred_check_branch
          %315 = sbr.rel (%p313) target = $region56
        $region55: #{tpu_custom_call.1} parent=51 // pred_region
          %316 = dma.done [#allocation3], 768
        $region56: #{tpu_custom_call.1} parent=51 // pred_fallthru
          _
        // Predicated region
        $region57: #{tpu_custom_call.1} parent=51 // pred_check
          %p317 = pneg %p109
        $region58: #{tpu_custom_call.1} parent=51 // pred_check_branch
          %319 = sbr.rel (%p317) target = $region60
        $region59: #{tpu_custom_call.1} parent=51 // pred_region
          %320 = dma.done [#allocation6], 1024
        $region60: #{tpu_custom_call.1} parent=51 // pred_fallthru
          _
        // Predicated region
        $region61: #{tpu_custom_call.1} parent=51 // pred_check
          %p321 = pneg %p130
        $region62: #{tpu_custom_call.1} parent=51 // pred_check_branch
          %323 = sbr.rel (%p321) target = $region64
        $region63: #{tpu_custom_call.1} parent=51 // pred_region
          %324 = dma.done [#allocation6], 4096
        $region64: #{tpu_custom_call.1} parent=51 // pred_fallthru
          _
        // Predicated region
        $region65: #{tpu_custom_call.1} parent=51 // pred_check
          %p325 = pneg %p172
        $region66: #{tpu_custom_call.1} parent=51 // pred_check_branch
          %327 = sbr.rel (%p325) target = $region68
        $region67: #{tpu_custom_call.1} parent=51 // pred_region
          %328 = dma.done [#allocation9], 1024
        $region68: #{tpu_custom_call.1} parent=51 // pred_fallthru
          _
        %p329 = scmp.lt.s32.totalorder %s25, 1
        %s330 = scalar_select %p329, %s25, 1
        %s331 = smul.addr %s330, 8
        %s332 = scalar_lea.vmem %s0, %s331
        %p333 = pneg %p46
        %p334 = pneg %p43
        %p335 = pneg %p67
        %p336 = pneg %p64
        %p337 = pneg %p88
        %p338 = pneg %p85
        %p339 = pneg %p109
        %p340 = pneg %p106
        %p341 = pneg %p130
        %p342 = pneg %p127
        %p343 = pneg %p151
        %p344 = pneg %p148
        %p345 = pneg %p172
        %p346 = pneg %p169
        %p347 = pneg %p193
        %p348 = pneg %p190
        %p349 = pneg %p219
        %p350 = pneg %p216
        %s351 = sand.u32 %s206, 1
        %s352 = scalar_lea.sflag [#allocation4], %s351
        %s353 = sand.u32 %s206, 1
        %s354 = smul.addr %s353, 8
        %s355 = scalar_lea.vmem [#allocation10], %s354
        %p356 = scmp.lt.s32.totalorder %s25, 1
        %s357 = scalar_select %p356, %s25, 1
        %s358 = smul.addr %s357, 8
        %s359 = scalar_lea.vmem %s0, %s358
        %v361 = vld [vmem:[%s359] sm:$0xff]
        %v362 = vcvt.s32.f32 %v361
        %363 = vxpose.xlu0.b32.start [1/16] %v362, 128
        %364 = vxpose.xlu0.b32.cont [2/16] 0.0, 128
        %365 = vxpose.xlu0.b32.cont [3/16] 0.0, 128
        %366 = vxpose.xlu0.b32.cont [4/16] 0.0, 128
        %367 = vxpose.xlu0.b32.cont [5/16] 0.0, 128
        %368 = vxpose.xlu0.b32.cont [6/16] 0.0, 128
        %369 = vxpose.xlu0.b32.cont [7/16] 0.0, 128
        %370 = vxpose.xlu0.b32.cont [8/16] 0.0, 128
        %371 = vxpose.xlu0.b32.cont [9/16] 0.0, 128
        %372 = vxpose.xlu0.b32.cont [10/16] 0.0, 128
        %373 = vxpose.xlu0.b32.cont [11/16] 0.0, 128
        %374 = vxpose.xlu0.b32.cont [12/16] 0.0, 128
        %375 = vxpose.xlu0.b32.cont [13/16] 0.0, 128
        %376 = vxpose.xlu0.b32.cont [14/16] 0.0, 128
        %377 = vxpose.xlu0.b32.cont [15/16] 0.0, 128
        %378 = vxpose.xlu0.b32.end [16/16] 0.0, 128
        %v379 = vpop.trf.xlu0
        %v380 = vpop.trf.xlu0
        %v381 = vpop.trf.xlu0
        %v382 = vpop.trf.xlu0
        %v383 = vpop.trf.xlu0
        %v384 = vpop.trf.xlu0
        %v385 = vpop.trf.xlu0
        %v386 = vpop.trf.xlu0
        %v387 = vpop.trf.xlu0
        %v388 = vpop.trf.xlu0
        %v389 = vpop.trf.xlu0
        %v390 = vpop.trf.xlu0
        %v391 = vpop.trf.xlu0
        %v392 = vpop.trf.xlu0
        %v393 = vpop.trf.xlu0
        %v394 = vpop.trf.xlu0
        %v395 = vlaneseq
        %v396 = vand.u32 %v395, 127
        %v397 = vcvt.s32.f32 %v396
        %v398 = vlaneseq
        %v399 = vshrl.u32 %v398, 7
        %v400 = vsub.s32 0, %v399
        %v401 = vrot.slane %v379, %v400
        %403 = vbcast.lane.b32.xlu0 %v401, 256
        %v404 = vpop.permute.xlu0 %403
        %v405 = vlaneseq
        %v406 = vshrl.u32 %v405, 7
        %v407 = vsub.s32 1, %v406
        %v408 = vrot.slane %v379, %v407
        %410 = vbcast.lane.b32.xlu0 %v408, 256
        %v411 = vpop.permute.xlu0 %410
        %v412 = vlaneseq
        %v413 = vshrl.u32 %v412, 7
        %v414 = vsub.s32 2, %v413
        %v415 = vrot.slane %v379, %v414
        %417 = vbcast.lane.b32.xlu0 %v415, 256
        %v418 = vpop.permute.xlu0 %417
        %v419 = vlaneseq
        %v420 = vshrl.u32 %v419, 7
        %v421 = vsub.s32 3, %v420
        %v422 = vrot.slane %v379, %v421
        %424 = vbcast.lane.b32.xlu0 %v422, 256
        %v425 = vpop.permute.xlu0 %424
        %v426 = vlaneseq
        %v427 = vshrl.u32 %v426, 7
        %v428 = vsub.s32 4, %v427
        %v429 = vrot.slane %v379, %v428
        %431 = vbcast.lane.b32.xlu0 %v429, 256
        %v432 = vpop.permute.xlu0 %431
        %v433 = vlaneseq
        %v434 = vshrl.u32 %v433, 7
        %v435 = vsub.s32 5, %v434
        %v436 = vrot.slane %v379, %v435
        %438 = vbcast.lane.b32.xlu0 %v436, 256
        %v439 = vpop.permute.xlu0 %438
        %v440 = vlaneseq
        %v441 = vshrl.u32 %v440, 7
        %v442 = vsub.s32 6, %v441
        %v443 = vrot.slane %v379, %v442
        %445 = vbcast.lane.b32.xlu0 %v443, 256
        %v446 = vpop.permute.xlu0 %445
        %v447 = vlaneseq
        %v448 = vshrl.u32 %v447, 7
        %v449 = vsub.s32 7, %v448
        %v450 = vrot.slane %v379, %v449
        %452 = vbcast.lane.b32.xlu0 %v450, 256
        %v453 = vpop.permute.xlu0 %452
        %vm454 = vcmp.eq.f32.partialorder %v404, %v397
        %vm455 = vcmp.eq.f32.partialorder %v411, %v397
        %vm456 = vcmp.eq.f32.partialorder %v418, %v397
        %vm457 = vcmp.eq.f32.partialorder %v425, %v397
        %vm458 = vcmp.eq.f32.partialorder %v432, %v397
        %vm459 = vcmp.eq.f32.partialorder %v439, %v397
        %vm460 = vcmp.eq.f32.partialorder %v446, %v397
        %vm461 = vcmp.eq.f32.partialorder %v453, %v397
        %v462 = vsel %vm454, 1, 0
        %v463 = vsel %vm455, 1, 0
        %v464 = vsel %vm456, 1, 0
        %v465 = vsel %vm457, 1, 0
        %v466 = vsel %vm458, 1, 0
        %v467 = vsel %vm459, 1, 0
        %v468 = vsel %vm460, 1, 0
        %v469 = vsel %vm461, 1, 0
        %v470 = vcvt.s32.f32 %v462
        %v471 = vcvt.s32.f32 %v463
        %v472 = vcvt.s32.f32 %v464
        %v473 = vcvt.s32.f32 %v465
        %v474 = vcvt.s32.f32 %v466
        %v475 = vcvt.s32.f32 %v467
        %v476 = vcvt.s32.f32 %v468
        %v477 = vcvt.s32.f32 %v469
        %v478 = vpack.c.bf16 %v470, %v470
        %v479 = vpack.c.bf16 %v471, %v471
        %v480 = vpack.c.bf16 %v472, %v472
        %v481 = vpack.c.bf16 %v473, %v473
        %v482 = vpack.c.bf16 %v474, %v474
        %v483 = vpack.c.bf16 %v475, %v475
        %v484 = vpack.c.bf16 %v476, %v476
        %v485 = vpack.c.bf16 %v477, %v477
        %v486 = vld [vmem:[#allocation2] sm:$0xf]
        %v487 = vld [vmem:[#allocation2 + $0x4] sm:$0xf]
        %v488 = vld [vmem:[#allocation2 + $0x8] sm:$0xf]
        %v489 = vld [vmem:[#allocation2 + $0xc] sm:$0xf]
        %s490 = scalar_lea.vmem [#allocation2], 16
        %v491 = vld [vmem:[%s490] sm:$0xf]
        %v492 = vld [vmem:[%s490 + $0x4] sm:$0xf]
        %v493 = vld [vmem:[%s490 + $0x8] sm:$0xf]
        %v494 = vld [vmem:[%s490 + $0xc] sm:$0xf]
        %v501 = vunpack.c.l.b16 %v479
        %v502 = vunpack.c.l.b16 %v480
        %v503 = vunpack.c.l.b16 %v481
        %v504 = vunpack.c.l.b16 %v482
        %v505 = vunpack.c.l.b16 %v483
        %v506 = vunpack.c.l.b16 %v484
        %v507 = vpack.c.b16 %v502, %v501
        %v508 = vpack.c.b16 %v504, %v503
        %v509 = vpack.c.b16 %v506, %v505
        %v514 = vunpack.c.l.b16 %v491
        %v515 = vunpack.c.l.b16 %v492
        %v516 = vunpack.c.l.b16 %v493
        %v517 = vunpack.c.l.b16 %v494
        %v518 = vpack.c.b16 %v515, %v514
        %v519 = vpack.c.b16 %v517, %v516
        %vm522 = vcmask 261120
        %v524 = vsel %vm522, %v507, 0
        %v527 = vsel %vm522, %v508, 0
        %v530 = vsel %vm522, %v509, 0
        %532 = vmatprep.subr.bf16.mxu0 0
        %533 = vmatpush1.bf16.msra.mxu0 %v518
        %534 = vmatprep.subr.bf16.mxu0 0
        %535 = vmatpush1.bf16.msra.mxu0 %v519
        %536 = vmatprep.subr.bf16.mxu0 0
        %537 = vmatpush1.bf16.msra.mxu0 0
        %538 = vmatprep.subr.bf16.mxu0 0
        %539 = vmatpush1.bf16.msra.mxu0 0
        %540 = vmatprep.subr.bf16.mxu0 0
        %541 = vmatpush1.bf16.msra.mxu0 0
        %542 = vmatprep.subr.bf16.mxu0 0
        %543 = vmatpush1.bf16.msra.mxu0 0
        %544 = vmatprep.subr.bf16.mxu0 0
        %545 = vmatpush1.bf16.msra.mxu0 0
        %546 = vmatprep.subr.bf16.mxu0 0
        %547 = vmatpush1.bf16.msra.mxu0 0
        %548 = vmatprep.subr.bf16.mxu0 0
        %549 = vmatpush1.bf16.msra.mxu0 0
        %550 = vmatprep.subr.bf16.mxu0 0
        %551 = vmatpush1.bf16.msra.mxu0 0
        %552 = vmatprep.subr.bf16.mxu0 0
        %553 = vmatpush1.bf16.msra.mxu0 0
        %554 = vmatprep.subr.bf16.mxu0 0
        %555 = vmatpush1.bf16.msra.mxu0 0
        %556 = vmatprep.subr.bf16.mxu0 0
        %557 = vmatpush1.bf16.msra.mxu0 0
        %558 = vmatprep.subr.bf16.mxu0 0
        %559 = vmatpush1.bf16.msra.mxu0 0
        %560 = vmatprep.subr.bf16.mxu0 0
        %561 = vmatpush1.bf16.msra.mxu0 0
        %562 = vmatprep.subr.bf16.mxu0 0
        %563 = vmatpush1.bf16.msra.mxu0 0
        %564 = vmatprep.mubr.bf16.mxu0 0
        %565 = vmatmul.mubr.bf16.gmra.mrb[0].mxu0 %v524
        %v566 = vpop.f32.mrb[0].mxu0
        %v567 = vadd.f32 0.0, %v566
        %v568 = vpop.f32.mrb[0].mxu0
        %v569 = vpop.f32.mrb[0].mxu0
        %v570 = vadd.f32 0.0, %v569
        %v571 = vpop.f32.mrb[0].mxu0
        %572 = vmatprep.mubr.bf16.mxu0 0
        %573 = vmatmul.mubr.bf16.gmra.mrb[0].mxu0 %v527
        %v574 = vpop.f32.mrb[0].mxu0
        %v575 = vadd.f32 0.0, %v574
        %v576 = vpop.f32.mrb[0].mxu0
        %v577 = vpop.f32.mrb[0].mxu0
        %v578 = vadd.f32 0.0, %v577
        %v579 = vpop.f32.mrb[0].mxu0
        %580 = vmatprep.mubr.bf16.mxu0 0
        %581 = vmatmul.mubr.bf16.gmra.mrb[0].mxu0 %v530
        %v582 = vpop.f32.mrb[0].mxu0
        %v583 = vadd.f32 0.0, %v582
        %v584 = vpop.f32.mrb[0].mxu0
        %v585 = vpop.f32.mrb[0].mxu0
        %v586 = vadd.f32 0.0, %v585
        %v587 = vpop.f32.mrb[0].mxu0
        %588 = vdwg.mxu0
        %v590 = vunpack.c.l.b16 %v478
        %v591 = vpack.c.b16 %v501, %v590
        %v592 = vpack.c.b16 %v503, %v502
        %v593 = vpack.c.b16 %v505, %v504
        %v598 = vunpack.c.l.b16 %v486
        %v599 = vunpack.c.l.b16 %v487
        %v600 = vunpack.c.l.b16 %v488
        %v601 = vunpack.c.l.b16 %v489
        %v602 = vpack.c.b16 %v599, %v598
        %v603 = vpack.c.b16 %v601, %v600
        %v607 = vsel %vm522, %v591, 0
        %v610 = vsel %vm522, %v592, 0
        %v613 = vsel %vm522, %v593, 0
        %615 = vmatprep.subr.bf16.mxu0 0
        %616 = vmatpush1.bf16.msra.mxu0 %v602
        %617 = vmatprep.subr.bf16.mxu0 0
        %618 = vmatpush1.bf16.msra.mxu0 %v603
        %619 = vmatprep.subr.bf16.mxu0 0
        %620 = vmatpush1.bf16.msra.mxu0 0
        %621 = vmatprep.subr.bf16.mxu0 0
        %622 = vmatpush1.bf16.msra.mxu0 0
        %623 = vmatprep.subr.bf16.mxu0 0
        %624 = vmatpush1.bf16.msra.mxu0 0
        %625 = vmatprep.subr.bf16.mxu0 0
        %626 = vmatpush1.bf16.msra.mxu0 0
        %627 = vmatprep.subr.bf16.mxu0 0
        %628 = vmatpush1.bf16.msra.mxu0 0
        %629 = vmatprep.subr.bf16.mxu0 0
        %630 = vmatpush1.bf16.msra.mxu0 0
        %631 = vmatprep.subr.bf16.mxu0 0
        %632 = vmatpush1.bf16.msra.mxu0 0
        %633 = vmatprep.subr.bf16.mxu0 0
        %634 = vmatpush1.bf16.msra.mxu0 0
        %635 = vmatprep.subr.bf16.mxu0 0
        %636 = vmatpush1.bf16.msra.mxu0 0
        %637 = vmatprep.subr.bf16.mxu0 0
        %638 = vmatpush1.bf16.msra.mxu0 0
        %639 = vmatprep.subr.bf16.mxu0 0
        %640 = vmatpush1.bf16.msra.mxu0 0
        %641 = vmatprep.subr.bf16.mxu0 0
        %642 = vmatpush1.bf16.msra.mxu0 0
        %643 = vmatprep.subr.bf16.mxu0 0
        %644 = vmatpush1.bf16.msra.mxu0 0
        %645 = vmatprep.subr.bf16.mxu0 0
        %646 = vmatpush1.bf16.msra.mxu0 0
        %647 = vmatprep.mubr.bf16.mxu0 0
        %648 = vmatmul.mubr.bf16.gmra.mrb[0].mxu0 %v607
        %v649 = vpop.f32.mrb[0].mxu0
        %v650 = vadd.f32 %v567, %v649
        %v651 = vpop.f32.mrb[0].mxu0
        %v652 = vpop.f32.mrb[0].mxu0
        %v653 = vadd.f32 %v570, %v652
        %v654 = vpop.f32.mrb[0].mxu0
        %655 = vmatprep.mubr.bf16.mxu0 0
        %656 = vmatmul.mubr.bf16.gmra.mrb[0].mxu0 %v610
        %v657 = vpop.f32.mrb[0].mxu0
        %v658 = vadd.f32 %v575, %v657
        %v659 = vpop.f32.mrb[0].mxu0
        %v660 = vpop.f32.mrb[0].mxu0
        %v661 = vadd.f32 %v578, %v660
        %v662 = vpop.f32.mrb[0].mxu0
        %663 = vmatprep.mubr.bf16.mxu0 0
        %664 = vmatmul.mubr.bf16.gmra.mrb[0].mxu0 %v613
        %v665 = vpop.f32.mrb[0].mxu0
        %v666 = vadd.f32 %v583, %v665
        %v667 = vpop.f32.mrb[0].mxu0
        %v668 = vpop.f32.mrb[0].mxu0
        %v669 = vadd.f32 %v586, %v668
        %v670 = vpop.f32.mrb[0].mxu0
        %671 = vdwg.mxu0
        %s672 = scalar_lea.vmem [#allocation2], 32
        %v673 = vld [vmem:[%s672] sm:$0xf]
        %v674 = vld [vmem:[%s672 + $0x4] sm:$0xf]
        %v675 = vld [vmem:[%s672 + $0x8] sm:$0xf]
        %v676 = vld [vmem:[%s672 + $0xc] sm:$0xf]
        %v678 = vunpack.c.l.b16 %v485
        %v679 = vpack.c.b16 %v678, %v506
        %v684 = vunpack.c.l.b16 %v673
        %v685 = vunpack.c.l.b16 %v674
        %v686 = vunpack.c.l.b16 %v675
        %v687 = vunpack.c.l.b16 %v676
        %v688 = vpack.c.b16 %v685, %v684
        %v689 = vpack.c.b16 %v687, %v686
        %v693 = vsel %vm522, %v679, 0
        %695 = vmatprep.subr.bf16.mxu0 0
        %696 = vmatpush1.bf16.msra.mxu0 %v688
        %697 = vmatprep.subr.bf16.mxu0 0
        %698 = vmatpush1.bf16.msra.mxu0 %v689
        %699 = vmatprep.subr.bf16.mxu0 0
        %700 = vmatpush1.bf16.msra.mxu0 0
        %701 = vmatprep.subr.bf16.mxu0 0
        %702 = vmatpush1.bf16.msra.mxu0 0
        %703 = vmatprep.subr.bf16.mxu0 0
        %704 = vmatpush1.bf16.msra.mxu0 0
        %705 = vmatprep.subr.bf16.mxu0 0
        %706 = vmatpush1.bf16.msra.mxu0 0
        %707 = vmatprep.subr.bf16.mxu0 0
        %708 = vmatpush1.bf16.msra.mxu0 0
        %709 = vmatprep.subr.bf16.mxu0 0
        %710 = vmatpush1.bf16.msra.mxu0 0
        %711 = vmatprep.subr.bf16.mxu0 0
        %712 = vmatpush1.bf16.msra.mxu0 0
        %713 = vmatprep.subr.bf16.mxu0 0
        %714 = vmatpush1.bf16.msra.mxu0 0
        %715 = vmatprep.subr.bf16.mxu0 0
        %716 = vmatpush1.bf16.msra.mxu0 0
        %717 = vmatprep.subr.bf16.mxu0 0
        %718 = vmatpush1.bf16.msra.mxu0 0
        %719 = vmatprep.subr.bf16.mxu0 0
        %720 = vmatpush1.bf16.msra.mxu0 0
        %721 = vmatprep.subr.bf16.mxu0 0
        %722 = vmatpush1.bf16.msra.mxu0 0
        %723 = vmatprep.subr.bf16.mxu0 0
        %724 = vmatpush1.bf16.msra.mxu0 0
        %725 = vmatprep.subr.bf16.mxu0 0
        %726 = vmatpush1.bf16.msra.mxu0 0
        %727 = vmatprep.mubr.bf16.mxu0 0
        %728 = vmatmul.mubr.bf16.gmra.mrb[0].mxu0 %v610
        %v729 = vpop.f32.mrb[0].mxu0
        %v730 = vadd.f32 0.0, %v729
        %v731 = vpop.f32.mrb[0].mxu0
        %v732 = vpop.f32.mrb[0].mxu0
        %v733 = vadd.f32 0.0, %v732
        %v734 = vpop.f32.mrb[0].mxu0
        %735 = vmatprep.mubr.bf16.mxu0 0
        %736 = vmatmul.mubr.bf16.gmra.mrb[0].mxu0 %v613
        %v737 = vpop.f32.mrb[0].mxu0
        %v738 = vadd.f32 0.0, %v737
        %v739 = vpop.f32.mrb[0].mxu0
        %v740 = vpop.f32.mrb[0].mxu0
        %v741 = vadd.f32 0.0, %v740
        %v742 = vpop.f32.mrb[0].mxu0
        %743 = vmatprep.mubr.bf16.mxu0 0
        %744 = vmatmul.mubr.bf16.gmra.mrb[0].mxu0 %v693
        %v745 = vpop.f32.mrb[0].mxu0
        %v746 = vadd.f32 0.0, %v745
        %v747 = vpop.f32.mrb[0].mxu0
        %v748 = vpop.f32.mrb[0].mxu0
        %v749 = vadd.f32 0.0, %v748
        %v750 = vpop.f32.mrb[0].mxu0
        %751 = vdwg.mxu0
        %v752 = vadd.f32 %v650, %v730
        %v753 = vadd.f32 %v653, %v733
        %v754 = vadd.f32 %v658, %v738
        %v755 = vadd.f32 %v661, %v741
        %v756 = vadd.f32 %v666, %v746
        %v757 = vadd.f32 %v669, %v749
        %v758 = vld [vmem:[%s2] sm:$0x1]
        %v760 = vlaneseq
        %v761 = vshrl.u32 %v760, 7
        %v762 = vsub.s32 0, %v761
        %v763 = vrot.slane %v758, %v762
        %v765 = vadd.f32 %v752, %v763
        %v766 = vadd.f32 %v753, %v763
        %v767 = vadd.f32 %v754, %v763
        %v768 = vadd.f32 %v755, %v763
        %v769 = vadd.f32 %v756, %v763
        %v770 = vadd.f32 %v757, %v763
        %v771 = vmax.f32 %v765, 0.0
        %v772 = vmax.f32 %v766, 0.0
        %v773 = vmax.f32 %v767, 0.0
        %v774 = vmax.f32 %v768, 0.0
        %v775 = vmax.f32 %v769, 0.0
        %v776 = vmax.f32 %v770, 0.0
        %v777 = vpack.c.bf16 %v772, %v771
        %v778 = vpack.c.bf16 %v774, %v773
        %v779 = vpack.c.bf16 %v776, %v775
        %v780 = vld [vmem:[#allocation5] sm:$0xff]
        %v781 = vld [vmem:[#allocation5 + $0x8] sm:$0xff]
        %v782 = vld [vmem:[#allocation5 + $0x10] sm:$0xff]
        %v783 = vld [vmem:[#allocation5 + $0x18] sm:$0xff]
        %v784 = vld [vmem:[#allocation5 + $0x20] sm:$0xff]
        %v785 = vld [vmem:[#allocation5 + $0x28] sm:$0xff]
        %v786 = vld [vmem:[#allocation5 + $0x30] sm:$0xff]
        %v787 = vld [vmem:[#allocation5 + $0x38] sm:$0xff]
        %v788 = vld [vmem:[%s5] sm:$0xf]
        %v790 = vlaneseq
        %v791 = vshrl.u32 %v790, 7
        %v792 = vsub.s32 0, %v791
        %v793 = vrot.slane %v788, %v792
        %v794 = vlaneseq
        %v795 = vshrl.u32 %v794, 7
        %v796 = vsub.s32 1, %v795
        %v797 = vrot.slane %v788, %v796
        %v798 = vlaneseq
        %v799 = vshrl.u32 %v798, 7
        %v800 = vsub.s32 2, %v799
        %v801 = vrot.slane %v788, %v800
        %v802 = vlaneseq
        %v803 = vshrl.u32 %v802, 7
        %v804 = vsub.s32 3, %v803
        %v805 = vrot.slane %v788, %v804
        %v818 = vunpack.c.l.b16 %v780
        %v819 = vunpack.c.h.b16 %v780
        %v820 = vunpack.c.l.b16 %v781
        %v821 = vunpack.c.h.b16 %v781
        %v822 = vunpack.c.l.b16 %v782
        %v823 = vunpack.c.h.b16 %v782
        %v824 = vunpack.c.l.b16 %v783
        %v825 = vunpack.c.h.b16 %v783
        %v826 = vunpack.c.l.b16 %v784
        %v827 = vunpack.c.h.b16 %v784
        %v828 = vunpack.c.l.b16 %v785
        %v829 = vunpack.c.h.b16 %v785
        %v830 = vunpack.c.l.b16 %v786
        %v831 = vunpack.c.h.b16 %v786
        %v832 = vunpack.c.l.b16 %v787
        %v833 = vunpack.c.h.b16 %v787
        %v834 = vpack.c.b16 %v822, %v818
        %v835 = vpack.c.b16 %v823, %v819
        %v836 = vpack.c.b16 %v824, %v820
        %v837 = vpack.c.b16 %v825, %v821
        %v838 = vpack.c.b16 %v830, %v826
        %v839 = vpack.c.b16 %v831, %v827
        %v840 = vpack.c.b16 %v832, %v828
        %v841 = vpack.c.b16 %v833, %v829
        %v851 = vsel %vm522, %v777, 0
        %v854 = vsel %vm522, %v778, 0
        %v857 = vsel %vm522, %v779, 0
        %859 = vmatprep.subr.bf16.mxu0 %v835
        %860 = vmatpush1.bf16.msra.mxu0 %v834
        %861 = vmatprep.subr.bf16.mxu0 %v839
        %862 = vmatpush1.bf16.msra.mxu0 %v838
        %863 = vmatprep.subr.bf16.mxu0 0
        %864 = vmatpush1.bf16.msra.mxu0 0
        %865 = vmatprep.subr.bf16.mxu0 0
        %866 = vmatpush1.bf16.msra.mxu0 0
        %867 = vmatprep.subr.bf16.mxu0 0
        %868 = vmatpush1.bf16.msra.mxu0 0
        %869 = vmatprep.subr.bf16.mxu0 0
        %870 = vmatpush1.bf16.msra.mxu0 0
        %871 = vmatprep.subr.bf16.mxu0 0
        %872 = vmatpush1.bf16.msra.mxu0 0
        %873 = vmatprep.subr.bf16.mxu0 0
        %874 = vmatpush1.bf16.msra.mxu0 0
        %875 = vmatprep.subr.bf16.mxu0 0
        %876 = vmatpush1.bf16.msra.mxu0 0
        %877 = vmatprep.subr.bf16.mxu0 0
        %878 = vmatpush1.bf16.msra.mxu0 0
        %879 = vmatprep.subr.bf16.mxu0 0
        %880 = vmatpush1.bf16.msra.mxu0 0
        %881 = vmatprep.subr.bf16.mxu0 0
        %882 = vmatpush1.bf16.msra.mxu0 0
        %883 = vmatprep.subr.bf16.mxu0 0
        %884 = vmatpush1.bf16.msra.mxu0 0
        %885 = vmatprep.subr.bf16.mxu0 0
        %886 = vmatpush1.bf16.msra.mxu0 0
        %887 = vmatprep.subr.bf16.mxu0 0
        %888 = vmatpush1.bf16.msra.mxu0 0
        %889 = vmatprep.subr.bf16.mxu0 0
        %890 = vmatpush1.bf16.msra.mxu0 0
        %891 = vmatprep.mubr.bf16.mxu0 0
        %892 = vmatmul.mubr.bf16.gmra.mrb[0].mxu0 %v851
        %v893 = vpop.f32.mrb[0].mxu0
        %v894 = vadd.f32 %v793, %v893
        %v895 = vpop.f32.mrb[0].mxu0
        %v896 = vadd.f32 %v797, %v895
        %v897 = vpop.f32.mrb[0].mxu0
        %v898 = vadd.f32 %v793, %v897
        %v899 = vpop.f32.mrb[0].mxu0
        %v900 = vadd.f32 %v797, %v899
        %901 = vmatprep.mubr.bf16.mxu0 0
        %902 = vmatmul.mubr.bf16.gmra.mrb[0].mxu0 %v854
        %v903 = vpop.f32.mrb[0].mxu0
        %v904 = vadd.f32 %v793, %v903
        %v905 = vpop.f32.mrb[0].mxu0
        %v906 = vadd.f32 %v797, %v905
        %v907 = vpop.f32.mrb[0].mxu0
        %v908 = vadd.f32 %v793, %v907
        %v909 = vpop.f32.mrb[0].mxu0
        %v910 = vadd.f32 %v797, %v909
        %911 = vmatprep.mubr.bf16.mxu0 0
        %912 = vmatmul.mubr.bf16.gmra.mrb[0].mxu0 %v857
        %v913 = vpop.f32.mrb[0].mxu0
        %v914 = vadd.f32 %v793, %v913
        %v915 = vpop.f32.mrb[0].mxu0
        %v916 = vadd.f32 %v797, %v915
        %v917 = vpop.f32.mrb[0].mxu0
        %v918 = vadd.f32 %v793, %v917
        %v919 = vpop.f32.mrb[0].mxu0
        %v920 = vadd.f32 %v797, %v919
        %921 = vdwg.mxu0
        %922 = vmatprep.subr.bf16.mxu0 %v837
        %923 = vmatpush1.bf16.msra.mxu0 %v836
        %924 = vmatprep.subr.bf16.mxu0 %v841
        %925 = vmatpush1.bf16.msra.mxu0 %v840
        %926 = vmatprep.subr.bf16.mxu0 0
        %927 = vmatpush1.bf16.msra.mxu0 0
        %928 = vmatprep.subr.bf16.mxu0 0
        %929 = vmatpush1.bf16.msra.mxu0 0
        %930 = vmatprep.subr.bf16.mxu0 0
        %931 = vmatpush1.bf16.msra.mxu0 0
        %932 = vmatprep.subr.bf16.mxu0 0
        %933 = vmatpush1.bf16.msra.mxu0 0
        %934 = vmatprep.subr.bf16.mxu0 0
        %935 = vmatpush1.bf16.msra.mxu0 0
        %936 = vmatprep.subr.bf16.mxu0 0
        %937 = vmatpush1.bf16.msra.mxu0 0
        %938 = vmatprep.subr.bf16.mxu0 0
        %939 = vmatpush1.bf16.msra.mxu0 0
        %940 = vmatprep.subr.bf16.mxu0 0
        %941 = vmatpush1.bf16.msra.mxu0 0
        %942 = vmatprep.subr.bf16.mxu0 0
        %943 = vmatpush1.bf16.msra.mxu0 0
        %944 = vmatprep.subr.bf16.mxu0 0
        %945 = vmatpush1.bf16.msra.mxu0 0
        %946 = vmatprep.subr.bf16.mxu0 0
        %947 = vmatpush1.bf16.msra.mxu0 0
        %948 = vmatprep.subr.bf16.mxu0 0
        %949 = vmatpush1.bf16.msra.mxu0 0
        %950 = vmatprep.subr.bf16.mxu0 0
        %951 = vmatpush1.bf16.msra.mxu0 0
        %952 = vmatprep.subr.bf16.mxu0 0
        %953 = vmatpush1.bf16.msra.mxu0 0
        %954 = vmatprep.mubr.bf16.mxu0 0
        %955 = vmatmul.mubr.bf16.gmra.mrb[0].mxu0 %v851
        %v956 = vpop.f32.mrb[0].mxu0
        %v957 = vadd.f32 %v801, %v956
        %v958 = vpop.f32.mrb[0].mxu0
        %v959 = vadd.f32 %v805, %v958
        %v960 = vpop.f32.mrb[0].mxu0
        %v961 = vadd.f32 %v801, %v960
        %v962 = vpop.f32.mrb[0].mxu0
        %v963 = vadd.f32 %v805, %v962
        %964 = vmatprep.mubr.bf16.mxu0 0
        %965 = vmatmul.mubr.bf16.gmra.mrb[0].mxu0 %v854
        %v966 = vpop.f32.mrb[0].mxu0
        %v967 = vadd.f32 %v801, %v966
        %v968 = vpop.f32.mrb[0].mxu0
        %v969 = vadd.f32 %v805, %v968
        %v970 = vpop.f32.mrb[0].mxu0
        %v971 = vadd.f32 %v801, %v970
        %v972 = vpop.f32.mrb[0].mxu0
        %v973 = vadd.f32 %v805, %v972
        %974 = vmatprep.mubr.bf16.mxu0 0
        %975 = vmatmul.mubr.bf16.gmra.mrb[0].mxu0 %v857
        %v976 = vpop.f32.mrb[0].mxu0
        %v977 = vadd.f32 %v801, %v976
        %v978 = vpop.f32.mrb[0].mxu0
        %v979 = vadd.f32 %v805, %v978
        %v980 = vpop.f32.mrb[0].mxu0
        %v981 = vadd.f32 %v801, %v980
        %v982 = vpop.f32.mrb[0].mxu0
        %v983 = vadd.f32 %v805, %v982
        %984 = vdwg.mxu0
        %v985 = vld [vmem:[#allocation7] sm:$0xff]
        %v986 = vld [vmem:[#allocation7 + $0x8] sm:$0xff]
        %v987 = vld [vmem:[#allocation7 + $0x10] sm:$0xff]
        %v988 = vld [vmem:[#allocation7 + $0x18] sm:$0xff]
        %v989 = vld [vmem:[#allocation7 + $0x20] sm:$0xff]
        %v990 = vld [vmem:[#allocation7 + $0x28] sm:$0xff]
        %v991 = vld [vmem:[#allocation7 + $0x30] sm:$0xff]
        %v992 = vld [vmem:[#allocation7 + $0x38] sm:$0xff]
        %v993 = vld [vmem:[#allocation7 + $0x40] sm:$0xff]
        %v994 = vld [vmem:[#allocation7 + $0x48] sm:$0xff]
        %v995 = vld [vmem:[#allocation7 + $0x50] sm:$0xff]
        %v996 = vld [vmem:[#allocation7 + $0x58] sm:$0xff]
        %v997 = vld [vmem:[#allocation7 + $0x60] sm:$0xff]
        %v998 = vld [vmem:[#allocation7 + $0x68] sm:$0xff]
        %v999 = vld [vmem:[#allocation7 + $0x70] sm:$0xff]
        %v1000 = vld [vmem:[#allocation7 + $0x78] sm:$0xff]
        %v1001 = vld [vmem:[#allocation7 + $0x80] sm:$0xff]
        %v1002 = vld [vmem:[#allocation7 + $0x88] sm:$0xff]
        %v1003 = vld [vmem:[#allocation7 + $0x90] sm:$0xff]
        %v1004 = vld [vmem:[#allocation7 + $0x98] sm:$0xff]
        %v1005 = vld [vmem:[#allocation7 + $0xa0] sm:$0xff]
        %v1006 = vld [vmem:[#allocation7 + $0xa8] sm:$0xff]
        %v1007 = vld [vmem:[#allocation7 + $0xb0] sm:$0xff]
        %v1008 = vld [vmem:[#allocation7 + $0xb8] sm:$0xff]
        %v1009 = vld [vmem:[#allocation7 + $0xc0] sm:$0xff]
        %v1010 = vld [vmem:[#allocation7 + $0xc8] sm:$0xff]
        %v1011 = vld [vmem:[#allocation7 + $0xd0] sm:$0xff]
        %v1012 = vld [vmem:[#allocation7 + $0xd8] sm:$0xff]
        %v1013 = vld [vmem:[#allocation7 + $0xe0] sm:$0xff]
        %v1014 = vld [vmem:[#allocation7 + $0xe8] sm:$0xff]
        %v1015 = vld [vmem:[#allocation7 + $0xf0] sm:$0xff]
        %v1016 = vld [vmem:[#allocation7 + $0xf8] sm:$0xff]
        %v1049 = vunpack.c.l.b16 %v985
        %v1050 = vunpack.c.h.b16 %v985
        %v1051 = vunpack.c.l.b16 %v986
        %v1052 = vunpack.c.h.b16 %v986
        %v1053 = vunpack.c.l.b16 %v987
        %v1054 = vunpack.c.h.b16 %v987
        %v1055 = vunpack.c.l.b16 %v988
        %v1056 = vunpack.c.h.b16 %v988
        %v1057 = vunpack.c.l.b16 %v989
        %v1058 = vunpack.c.h.b16 %v989
        %v1059 = vunpack.c.l.b16 %v990
        %v1060 = vunpack.c.h.b16 %v990
        %v1061 = vunpack.c.l.b16 %v991
        %v1062 = vunpack.c.h.b16 %v991
        %v1063 = vunpack.c.l.b16 %v992
        %v1064 = vunpack.c.h.b16 %v992
        %v1065 = vunpack.c.l.b16 %v993
        %v1066 = vunpack.c.h.b16 %v993
        %v1067 = vunpack.c.l.b16 %v994
        %v1068 = vunpack.c.h.b16 %v994
        %v1069 = vunpack.c.l.b16 %v995
        %v1070 = vunpack.c.h.b16 %v995
        %v1071 = vunpack.c.l.b16 %v996
        %v1072 = vunpack.c.h.b16 %v996
        %v1073 = vunpack.c.l.b16 %v997
        %v1074 = vunpack.c.h.b16 %v997
        %v1075 = vunpack.c.l.b16 %v998
        %v1076 = vunpack.c.h.b16 %v998
        %v1077 = vunpack.c.l.b16 %v999
        %v1078 = vunpack.c.h.b16 %v999
        %v1079 = vunpack.c.l.b16 %v1000
        %v1080 = vunpack.c.h.b16 %v1000
        %v1081 = vunpack.c.l.b16 %v1001
        %v1082 = vunpack.c.h.b16 %v1001
        %v1083 = vunpack.c.l.b16 %v1002
        %v1084 = vunpack.c.h.b16 %v1002
        %v1085 = vunpack.c.l.b16 %v1003
        %v1086 = vunpack.c.h.b16 %v1003
        %v1087 = vunpack.c.l.b16 %v1004
        %v1088 = vunpack.c.h.b16 %v1004
        %v1089 = vunpack.c.l.b16 %v1005
        %v1090 = vunpack.c.h.b16 %v1005
        %v1091 = vunpack.c.l.b16 %v1006
        %v1092 = vunpack.c.h.b16 %v1006
        %v1093 = vunpack.c.l.b16 %v1007
        %v1094 = vunpack.c.h.b16 %v1007
        %v1095 = vunpack.c.l.b16 %v1008
        %v1096 = vunpack.c.h.b16 %v1008
        %v1097 = vunpack.c.l.b16 %v1009
        %v1098 = vunpack.c.h.b16 %v1009
        %v1099 = vunpack.c.l.b16 %v1010
        %v1100 = vunpack.c.h.b16 %v1010
        %v1101 = vunpack.c.l.b16 %v1011
        %v1102 = vunpack.c.h.b16 %v1011
        %v1103 = vunpack.c.l.b16 %v1012
        %v1104 = vunpack.c.h.b16 %v1012
        %v1105 = vunpack.c.l.b16 %v1013
        %v1106 = vunpack.c.h.b16 %v1013
        %v1107 = vunpack.c.l.b16 %v1014
        %v1108 = vunpack.c.h.b16 %v1014
        %v1109 = vunpack.c.l.b16 %v1015
        %v1110 = vunpack.c.h.b16 %v1015
        %v1111 = vunpack.c.l.b16 %v1016
        %v1112 = vunpack.c.h.b16 %v1016
        %v1113 = vpack.c.b16 %v1053, %v1049
        %v1114 = vpack.c.b16 %v1054, %v1050
        %v1115 = vpack.c.b16 %v1055, %v1051
        %v1116 = vpack.c.b16 %v1056, %v1052
        %v1117 = vpack.c.b16 %v1061, %v1057
        %v1118 = vpack.c.b16 %v1062, %v1058
        %v1119 = vpack.c.b16 %v1063, %v1059
        %v1120 = vpack.c.b16 %v1064, %v1060
        %v1121 = vpack.c.b16 %v1069, %v1065
        %v1122 = vpack.c.b16 %v1070, %v1066
        %v1123 = vpack.c.b16 %v1071, %v1067
        %v1124 = vpack.c.b16 %v1072, %v1068
        %v1125 = vpack.c.b16 %v1077, %v1073
        %v1126 = vpack.c.b16 %v1078, %v1074
        %v1127 = vpack.c.b16 %v1079, %v1075
        %v1128 = vpack.c.b16 %v1080, %v1076
        %v1129 = vpack.c.b16 %v1085, %v1081
        %v1130 = vpack.c.b16 %v1086, %v1082
        %v1131 = vpack.c.b16 %v1087, %v1083
        %v1132 = vpack.c.b16 %v1088, %v1084
        %v1133 = vpack.c.b16 %v1093, %v1089
        %v1134 = vpack.c.b16 %v1094, %v1090
        %v1135 = vpack.c.b16 %v1095, %v1091
        %v1136 = vpack.c.b16 %v1096, %v1092
        %v1137 = vpack.c.b16 %v1101, %v1097
        %v1138 = vpack.c.b16 %v1102, %v1098
        %v1139 = vpack.c.b16 %v1103, %v1099
        %v1140 = vpack.c.b16 %v1104, %v1100
        %v1141 = vpack.c.b16 %v1109, %v1105
        %v1142 = vpack.c.b16 %v1110, %v1106
        %v1143 = vpack.c.b16 %v1111, %v1107
        %v1144 = vpack.c.b16 %v1112, %v1108
        %1177 = vmatprep.subr.bf16.mxu0 %v1114
        %1178 = vmatpush1.bf16.msra.mxu0 %v1113
        %1179 = vmatprep.subr.bf16.mxu0 %v1118
        %1180 = vmatpush1.bf16.msra.mxu0 %v1117
        %1181 = vmatprep.subr.bf16.mxu0 %v1122
        %1182 = vmatpush1.bf16.msra.mxu0 %v1121
        %1183 = vmatprep.subr.bf16.mxu0 %v1126
        %1184 = vmatpush1.bf16.msra.mxu0 %v1125
        %1185 = vmatprep.subr.bf16.mxu0 %v1130
        %1186 = vmatpush1.bf16.msra.mxu0 %v1129
        %1187 = vmatprep.subr.bf16.mxu0 %v1134
        %1188 = vmatpush1.bf16.msra.mxu0 %v1133
        %1189 = vmatprep.subr.bf16.mxu0 %v1138
        %1190 = vmatpush1.bf16.msra.mxu0 %v1137
        %1191 = vmatprep.subr.bf16.mxu0 %v1142
        %1192 = vmatpush1.bf16.msra.mxu0 %v1141
        %1193 = vmatprep.subr.bf16.mxu0 0
        %1194 = vmatpush1.bf16.msra.mxu0 0
        %1195 = vmatprep.subr.bf16.mxu0 0
        %1196 = vmatpush1.bf16.msra.mxu0 0
        %1197 = vmatprep.subr.bf16.mxu0 0
        %1198 = vmatpush1.bf16.msra.mxu0 0
        %1199 = vmatprep.subr.bf16.mxu0 0
        %1200 = vmatpush1.bf16.msra.mxu0 0
        %1201 = vmatprep.subr.bf16.mxu0 0
        %1202 = vmatpush1.bf16.msra.mxu0 0
        %1203 = vmatprep.subr.bf16.mxu0 0
        %1204 = vmatpush1.bf16.msra.mxu0 0
        %1205 = vmatprep.subr.bf16.mxu0 0
        %1206 = vmatpush1.bf16.msra.mxu0 0
        %1207 = vmatprep.subr.bf16.mxu0 0
        %1208 = vmatpush1.bf16.msra.mxu0 0
        %1209 = vmatprep.mubr.bf16.mxu0 0
        %1210 = vmatmul.mubr.bf16.gmra.mrb[0].mxu0 0
        %v1211 = vpop.f32.mrb[0].mxu0
        %v1212 = vadd.f32 0.0, %v1211
        %v1213 = vpop.f32.mrb[0].mxu0
        %v1214 = vadd.f32 0.0, %v1213
        %v1215 = vpop.f32.mrb[0].mxu0
        %v1216 = vpop.f32.mrb[0].mxu0
        %1217 = vdwg.mxu0
        %1218 = vmatprep.subr.bf16.mxu0 %v1116
        %1219 = vmatpush1.bf16.msra.mxu0 %v1115
        %1220 = vmatprep.subr.bf16.mxu0 %v1120
        %1221 = vmatpush1.bf16.msra.mxu0 %v1119
        %1222 = vmatprep.subr.bf16.mxu0 %v1124
        %1223 = vmatpush1.bf16.msra.mxu0 %v1123
        %1224 = vmatprep.subr.bf16.mxu0 %v1128
        %1225 = vmatpush1.bf16.msra.mxu0 %v1127
        %1226 = vmatprep.subr.bf16.mxu0 %v1132
        %1227 = vmatpush1.bf16.msra.mxu0 %v1131
        %1228 = vmatprep.subr.bf16.mxu0 %v1136
        %1229 = vmatpush1.bf16.msra.mxu0 %v1135
        %1230 = vmatprep.subr.bf16.mxu0 %v1140
        %1231 = vmatpush1.bf16.msra.mxu0 %v1139
        %1232 = vmatprep.subr.bf16.mxu0 %v1144
        %1233 = vmatpush1.bf16.msra.mxu0 %v1143
        %1234 = vmatprep.subr.bf16.mxu0 0
        %1235 = vmatpush1.bf16.msra.mxu0 0
        %1236 = vmatprep.subr.bf16.mxu0 0
        %1237 = vmatpush1.bf16.msra.mxu0 0
        %1238 = vmatprep.subr.bf16.mxu0 0
        %1239 = vmatpush1.bf16.msra.mxu0 0
        %1240 = vmatprep.subr.bf16.mxu0 0
        %1241 = vmatpush1.bf16.msra.mxu0 0
        %1242 = vmatprep.subr.bf16.mxu0 0
        %1243 = vmatpush1.bf16.msra.mxu0 0
        %1244 = vmatprep.subr.bf16.mxu0 0
        %1245 = vmatpush1.bf16.msra.mxu0 0
        %1246 = vmatprep.subr.bf16.mxu0 0
        %1247 = vmatpush1.bf16.msra.mxu0 0
        %1248 = vmatprep.subr.bf16.mxu0 0
        %1249 = vmatpush1.bf16.msra.mxu0 0
        %1250 = vmatprep.mubr.bf16.mxu0 0
        %1251 = vmatmul.mubr.bf16.gmra.mrb[0].mxu0 0
        %v1252 = vpop.f32.mrb[0].mxu0
        %v1253 = vadd.f32 0.0, %v1252
        %v1254 = vpop.f32.mrb[0].mxu0
        %v1255 = vadd.f32 0.0, %v1254
        %v1256 = vpop.f32.mrb[0].mxu0
        %v1257 = vpop.f32.mrb[0].mxu0
        %1258 = vdwg.mxu0
        %v1259 = vadd.f32 %v894, %v1212
        %v1260 = vadd.f32 %v896, %v1214
        %v1261 = vadd.f32 %v957, %v1253
        %v1262 = vadd.f32 %v959, %v1255
        %v1263 = vxor.u32 %v1259, 2147483648
        %v1264 = vxor.u32 %v1260, 2147483648
        %v1265 = vxor.u32 %v1262, 2147483648
        %v1266 = vmul.f32 %v1263, 1.442695
        %v1267 = vpow.pop %v1266
        %v1268 = vmul.f32 %v1264, 1.442695
        %v1269 = vpow.pop %v1268
        %v1270 = vmul.f32 %v1265, 1.442695
        %v1271 = vpow.pop %v1270
        %v1272 = vadd.f32 %v1267, 1.0
        %v1273 = vadd.f32 %v1269, 1.0
        %v1274 = vadd.f32 %v1271, 1.0
        %v1275 = vrcp.pop %v1272
        %v1276 = vmul.f32 1.0, %v1275
        %v1277 = vrcp.pop %v1273
        %v1278 = vmul.f32 1.0, %v1277
        %v1279 = vrcp.pop %v1274
        %v1280 = vmul.f32 1.0, %v1279
        %v1281 = vtanh.pop %v1261
        %v1282 = vmul.f32 %v1278, 0.0
        %v1283 = vmul.f32 %v1276, %v1281
        %v1284 = vadd.f32 %v1282, %v1283
        %v1285 = vtanh.pop %v1284
        %v1286 = vmul.f32 %v1280, %v1285
        %v1287 = vpack.c.bf16 %v1286, %v1286
        %1288 = vmatprep.subr.bf16.mxu0 %v1114
        %1289 = vmatpush1.bf16.msra.mxu0 %v1113
        %1290 = vmatprep.subr.bf16.mxu0 %v1118
        %1291 = vmatpush1.bf16.msra.mxu0 %v1117
        %1292 = vmatprep.subr.bf16.mxu0 %v1122
        %1293 = vmatpush1.bf16.msra.mxu0 %v1121
        %1294 = vmatprep.subr.bf16.mxu0 %v1126
        %1295 = vmatpush1.bf16.msra.mxu0 %v1125
        %1296 = vmatprep.subr.bf16.mxu0 %v1130
        %1297 = vmatpush1.bf16.msra.mxu0 %v1129
        %1298 = vmatprep.subr.bf16.mxu0 %v1134
        %1299 = vmatpush1.bf16.msra.mxu0 %v1133
        %1300 = vmatprep.subr.bf16.mxu0 %v1138
        %1301 = vmatpush1.bf16.msra.mxu0 %v1137
        %1302 = vmatprep.subr.bf16.mxu0 %v1142
        %1303 = vmatpush1.bf16.msra.mxu0 %v1141
        %1304 = vmatprep.subr.bf16.mxu0 0
        %1305 = vmatpush1.bf16.msra.mxu0 0
        %1306 = vmatprep.subr.bf16.mxu0 0
        %1307 = vmatpush1.bf16.msra.mxu0 0
        %1308 = vmatprep.subr.bf16.mxu0 0
        %1309 = vmatpush1.bf16.msra.mxu0 0
        %1310 = vmatprep.subr.bf16.mxu0 0
        %1311 = vmatpush1.bf16.msra.mxu0 0
        %1312 = vmatprep.subr.bf16.mxu0 0
        %1313 = vmatpush1.bf16.msra.mxu0 0
        %1314 = vmatprep.subr.bf16.mxu0 0
        %1315 = vmatpush1.bf16.msra.mxu0 0
        %1316 = vmatprep.subr.bf16.mxu0 0
        %1317 = vmatpush1.bf16.msra.mxu0 0
        %1318 = vmatprep.subr.bf16.mxu0 0
        %1319 = vmatpush1.bf16.msra.mxu0 0
        %1320 = vmatprep.mubr.bf16.mxu0 0
        %1321 = vmatmul.mubr.bf16.gmra.mrb[0].mxu0 %v1287
        %v1322 = vpop.f32.mrb[0].mxu0
        %v1323 = vadd.f32 0.0, %v1322
        %v1324 = vpop.f32.mrb[0].mxu0
        %v1325 = vadd.f32 0.0, %v1324
        %v1326 = vpop.f32.mrb[0].mxu0
        %v1327 = vpop.f32.mrb[0].mxu0
        %1328 = vdwg.mxu0
        %1329 = vmatprep.subr.bf16.mxu0 %v1116
        %1330 = vmatpush1.bf16.msra.mxu0 %v1115
        %1331 = vmatprep.subr.bf16.mxu0 %v1120
        %1332 = vmatpush1.bf16.msra.mxu0 %v1119
        %1333 = vmatprep.subr.bf16.mxu0 %v1124
        %1334 = vmatpush1.bf16.msra.mxu0 %v1123
        %1335 = vmatprep.subr.bf16.mxu0 %v1128
        %1336 = vmatpush1.bf16.msra.mxu0 %v1127
        %1337 = vmatprep.subr.bf16.mxu0 %v1132
        %1338 = vmatpush1.bf16.msra.mxu0 %v1131
        %1339 = vmatprep.subr.bf16.mxu0 %v1136
        %1340 = vmatpush1.bf16.msra.mxu0 %v1135
        %1341 = vmatprep.subr.bf16.mxu0 %v1140
        %1342 = vmatpush1.bf16.msra.mxu0 %v1139
        %1343 = vmatprep.subr.bf16.mxu0 %v1144
        %1344 = vmatpush1.bf16.msra.mxu0 %v1143
        %1345 = vmatprep.subr.bf16.mxu0 0
        %1346 = vmatpush1.bf16.msra.mxu0 0
        %1347 = vmatprep.subr.bf16.mxu0 0
        %1348 = vmatpush1.bf16.msra.mxu0 0
        %1349 = vmatprep.subr.bf16.mxu0 0
        %1350 = vmatpush1.bf16.msra.mxu0 0
        %1351 = vmatprep.subr.bf16.mxu0 0
        %1352 = vmatpush1.bf16.msra.mxu0 0
        %1353 = vmatprep.subr.bf16.mxu0 0
        %1354 = vmatpush1.bf16.msra.mxu0 0
        %1355 = vmatprep.subr.bf16.mxu0 0
        %1356 = vmatpush1.bf16.msra.mxu0 0
        %1357 = vmatprep.subr.bf16.mxu0 0
        %1358 = vmatpush1.bf16.msra.mxu0 0
        %1359 = vmatprep.subr.bf16.mxu0 0
        %1360 = vmatpush1.bf16.msra.mxu0 0
        %1361 = vmatprep.mubr.bf16.mxu0 0
        %1362 = vmatmul.mubr.bf16.gmra.mrb[0].mxu0 %v1287
        %v1363 = vpop.f32.mrb[0].mxu0
        %v1364 = vadd.f32 0.0, %v1363
        %v1365 = vpop.f32.mrb[0].mxu0
        %v1366 = vadd.f32 0.0, %v1365
        %v1367 = vpop.f32.mrb[0].mxu0
        %v1368 = vpop.f32.mrb[0].mxu0
        %1369 = vdwg.mxu0
        %v1370 = vadd.f32 %v898, %v1323
        %v1371 = vadd.f32 %v900, %v1325
        %v1372 = vadd.f32 %v961, %v1364
        %v1373 = vadd.f32 %v963, %v1366
        %v1374 = vxor.u32 %v1370, 2147483648
        %v1375 = vxor.u32 %v1371, 2147483648
        %v1376 = vxor.u32 %v1373, 2147483648
        %v1377 = vmul.f32 %v1374, 1.442695
        %v1378 = vpow.pop %v1377
        %v1379 = vmul.f32 %v1375, 1.442695
        %v1380 = vpow.pop %v1379
        %v1381 = vmul.f32 %v1376, 1.442695
        %v1382 = vpow.pop %v1381
        %v1383 = vadd.f32 %v1378, 1.0
        %v1384 = vadd.f32 %v1380, 1.0
        %v1385 = vadd.f32 %v1382, 1.0
        %v1386 = vrcp.pop %v1383
        %v1387 = vmul.f32 1.0, %v1386
        %v1388 = vrcp.pop %v1384
        %v1389 = vmul.f32 1.0, %v1388
        %v1390 = vrcp.pop %v1385
        %v1391 = vmul.f32 1.0, %v1390
        %v1392 = vtanh.pop %v1372
        %v1393 = vmul.f32 %v1389, %v1284
        %v1394 = vmul.f32 %v1387, %v1392
        %v1395 = vadd.f32 %v1393, %v1394
        %v1396 = vtanh.pop %v1395
        %v1397 = vmul.f32 %v1391, %v1396
        %v1398 = vpack.c.bf16 %v1397, %v1397
        %1399 = vmatprep.subr.bf16.mxu0 %v1114
        %1400 = vmatpush1.bf16.msra.mxu0 %v1113
        %1401 = vmatprep.subr.bf16.mxu0 %v1118
        %1402 = vmatpush1.bf16.msra.mxu0 %v1117
        %1403 = vmatprep.subr.bf16.mxu0 %v1122
        %1404 = vmatpush1.bf16.msra.mxu0 %v1121
        %1405 = vmatprep.subr.bf16.mxu0 %v1126
        %1406 = vmatpush1.bf16.msra.mxu0 %v1125
        %1407 = vmatprep.subr.bf16.mxu0 %v1130
        %1408 = vmatpush1.bf16.msra.mxu0 %v1129
        %1409 = vmatprep.subr.bf16.mxu0 %v1134
        %1410 = vmatpush1.bf16.msra.mxu0 %v1133
        %1411 = vmatprep.subr.bf16.mxu0 %v1138
        %1412 = vmatpush1.bf16.msra.mxu0 %v1137
        %1413 = vmatprep.subr.bf16.mxu0 %v1142
        %1414 = vmatpush1.bf16.msra.mxu0 %v1141
        %1415 = vmatprep.subr.bf16.mxu0 0
        %1416 = vmatpush1.bf16.msra.mxu0 0
        %1417 = vmatprep.subr.bf16.mxu0 0
        %1418 = vmatpush1.bf16.msra.mxu0 0
        %1419 = vmatprep.subr.bf16.mxu0 0
        %1420 = vmatpush1.bf16.msra.mxu0 0
        %1421 = vmatprep.subr.bf16.mxu0 0
        %1422 = vmatpush1.bf16.msra.mxu0 0
        %1423 = vmatprep.subr.bf16.mxu0 0
        %1424 = vmatpush1.bf16.msra.mxu0 0
        %1425 = vmatprep.subr.bf16.mxu0 0
        %1426 = vmatpush1.bf16.msra.mxu0 0
        %1427 = vmatprep.subr.bf16.mxu0 0
        %1428 = vmatpush1.bf16.msra.mxu0 0
        %1429 = vmatprep.subr.bf16.mxu0 0
        %1430 = vmatpush1.bf16.msra.mxu0 0
        %1431 = vmatprep.mubr.bf16.mxu0 0
        %1432 = vmatmul.mubr.bf16.gmra.mrb[0].mxu0 %v1398
        %v1433 = vpop.f32.mrb[0].mxu0
        %v1434 = vadd.f32 0.0, %v1433
        %v1435 = vpop.f32.mrb[0].mxu0
        %v1436 = vadd.f32 0.0, %v1435
        %v1437 = vpop.f32.mrb[0].mxu0
        %v1438 = vpop.f32.mrb[0].mxu0
        %1439 = vdwg.mxu0
        %1440 = vmatprep.subr.bf16.mxu0 %v1116
        %1441 = vmatpush1.bf16.msra.mxu0 %v1115
        %1442 = vmatprep.subr.bf16.mxu0 %v1120
        %1443 = vmatpush1.bf16.msra.mxu0 %v1119
        %1444 = vmatprep.subr.bf16.mxu0 %v1124
        %1445 = vmatpush1.bf16.msra.mxu0 %v1123
        %1446 = vmatprep.subr.bf16.mxu0 %v1128
        %1447 = vmatpush1.bf16.msra.mxu0 %v1127
        %1448 = vmatprep.subr.bf16.mxu0 %v1132
        %1449 = vmatpush1.bf16.msra.mxu0 %v1131
        %1450 = vmatprep.subr.bf16.mxu0 %v1136
        %1451 = vmatpush1.bf16.msra.mxu0 %v1135
        %1452 = vmatprep.subr.bf16.mxu0 %v1140
        %1453 = vmatpush1.bf16.msra.mxu0 %v1139
        %1454 = vmatprep.subr.bf16.mxu0 %v1144
        %1455 = vmatpush1.bf16.msra.mxu0 %v1143
        %1456 = vmatprep.subr.bf16.mxu0 0
        %1457 = vmatpush1.bf16.msra.mxu0 0
        %1458 = vmatprep.subr.bf16.mxu0 0
        %1459 = vmatpush1.bf16.msra.mxu0 0
        %1460 = vmatprep.subr.bf16.mxu0 0
        %1461 = vmatpush1.bf16.msra.mxu0 0
        %1462 = vmatprep.subr.bf16.mxu0 0
        %1463 = vmatpush1.bf16.msra.mxu0 0
        %1464 = vmatprep.subr.bf16.mxu0 0
        %1465 = vmatpush1.bf16.msra.mxu0 0
        %1466 = vmatprep.subr.bf16.mxu0 0
        %1467 = vmatpush1.bf16.msra.mxu0 0
        %1468 = vmatprep.subr.bf16.mxu0 0
        %1469 = vmatpush1.bf16.msra.mxu0 0
        %1470 = vmatprep.subr.bf16.mxu0 0
        %1471 = vmatpush1.bf16.msra.mxu0 0
        %1472 = vmatprep.mubr.bf16.mxu0 0
        %1473 = vmatmul.mubr.bf16.gmra.mrb[0].mxu0 %v1398
        %v1474 = vpop.f32.mrb[0].mxu0
        %v1475 = vadd.f32 0.0, %v1474
        %v1476 = vpop.f32.mrb[0].mxu0
        %v1477 = vadd.f32 0.0, %v1476
        %v1478 = vpop.f32.mrb[0].mxu0
        %v1479 = vpop.f32.mrb[0].mxu0
        %1480 = vdwg.mxu0
        %v1481 = vadd.f32 %v904, %v1434
        %v1482 = vadd.f32 %v906, %v1436
        %v1483 = vadd.f32 %v967, %v1475
        %v1484 = vadd.f32 %v969, %v1477
        %v1485 = vxor.u32 %v1481, 2147483648
        %v1486 = vxor.u32 %v1482, 2147483648
        %v1487 = vxor.u32 %v1484, 2147483648
        %v1488 = vmul.f32 %v1485, 1.442695
        %v1489 = vpow.pop %v1488
        %v1490 = vmul.f32 %v1486, 1.442695
        %v1491 = vpow.pop %v1490
        %v1492 = vmul.f32 %v1487, 1.442695
        %v1493 = vpow.pop %v1492
        %v1494 = vadd.f32 %v1489, 1.0
        %v1495 = vadd.f32 %v1491, 1.0
        %v1496 = vadd.f32 %v1493, 1.0
        %v1497 = vrcp.pop %v1494
        %v1498 = vmul.f32 1.0, %v1497
        %v1499 = vrcp.pop %v1495
        %v1500 = vmul.f32 1.0, %v1499
        %v1501 = vrcp.pop %v1496
        %v1502 = vmul.f32 1.0, %v1501
        %v1503 = vtanh.pop %v1483
        %v1504 = vmul.f32 %v1500, %v1395
        %v1505 = vmul.f32 %v1498, %v1503
        %v1506 = vadd.f32 %v1504, %v1505
        %v1507 = vtanh.pop %v1506
        %v1508 = vmul.f32 %v1502, %v1507
        %v1509 = vpack.c.bf16 %v1508, %v1508
        %1510 = vmatprep.subr.bf16.mxu0 %v1114
        %1511 = vmatpush1.bf16.msra.mxu0 %v1113
        %1512 = vmatprep.subr.bf16.mxu0 %v1118
        %1513 = vmatpush1.bf16.msra.mxu0 %v1117
        %1514 = vmatprep.subr.bf16.mxu0 %v1122
        %1515 = vmatpush1.bf16.msra.mxu0 %v1121
        %1516 = vmatprep.subr.bf16.mxu0 %v1126
        %1517 = vmatpush1.bf16.msra.mxu0 %v1125
        %1518 = vmatprep.subr.bf16.mxu0 %v1130
        %1519 = vmatpush1.bf16.msra.mxu0 %v1129
        %1520 = vmatprep.subr.bf16.mxu0 %v1134
        %1521 = vmatpush1.bf16.msra.mxu0 %v1133
        %1522 = vmatprep.subr.bf16.mxu0 %v1138
        %1523 = vmatpush1.bf16.msra.mxu0 %v1137
        %1524 = vmatprep.subr.bf16.mxu0 %v1142
        %1525 = vmatpush1.bf16.msra.mxu0 %v1141
        %1526 = vmatprep.subr.bf16.mxu0 0
        %1527 = vmatpush1.bf16.msra.mxu0 0
        %1528 = vmatprep.subr.bf16.mxu0 0
        %1529 = vmatpush1.bf16.msra.mxu0 0
        %1530 = vmatprep.subr.bf16.mxu0 0
        %1531 = vmatpush1.bf16.msra.mxu0 0
        %1532 = vmatprep.subr.bf16.mxu0 0
        %1533 = vmatpush1.bf16.msra.mxu0 0
        %1534 = vmatprep.subr.bf16.mxu0 0
        %1535 = vmatpush1.bf16.msra.mxu0 0
        %1536 = vmatprep.subr.bf16.mxu0 0
        %1537 = vmatpush1.bf16.msra.mxu0 0
        %1538 = vmatprep.subr.bf16.mxu0 0
        %1539 = vmatpush1.bf16.msra.mxu0 0
        %1540 = vmatprep.subr.bf16.mxu0 0
        %1541 = vmatpush1.bf16.msra.mxu0 0
        %1542 = vmatprep.mubr.bf16.mxu0 0
        %1543 = vmatmul.mubr.bf16.gmra.mrb[0].mxu0 %v1509
        %v1544 = vpop.f32.mrb[0].mxu0
        %v1545 = vadd.f32 0.0, %v1544
        %v1546 = vpop.f32.mrb[0].mxu0
        %v1547 = vadd.f32 0.0, %v1546
        %v1548 = vpop.f32.mrb[0].mxu0
        %v1549 = vpop.f32.mrb[0].mxu0
        %1550 = vdwg.mxu0
        %1551 = vmatprep.subr.bf16.mxu0 %v1116
        %1552 = vmatpush1.bf16.msra.mxu0 %v1115
        %1553 = vmatprep.subr.bf16.mxu0 %v1120
        %1554 = vmatpush1.bf16.msra.mxu0 %v1119
        %1555 = vmatprep.subr.bf16.mxu0 %v1124
        %1556 = vmatpush1.bf16.msra.mxu0 %v1123
        %1557 = vmatprep.subr.bf16.mxu0 %v1128
        %1558 = vmatpush1.bf16.msra.mxu0 %v1127
        %1559 = vmatprep.subr.bf16.mxu0 %v1132
        %1560 = vmatpush1.bf16.msra.mxu0 %v1131
        %1561 = vmatprep.subr.bf16.mxu0 %v1136
        %1562 = vmatpush1.bf16.msra.mxu0 %v1135
        %1563 = vmatprep.subr.bf16.mxu0 %v1140
        %1564 = vmatpush1.bf16.msra.mxu0 %v1139
        %1565 = vmatprep.subr.bf16.mxu0 %v1144
        %1566 = vmatpush1.bf16.msra.mxu0 %v1143
        %1567 = vmatprep.subr.bf16.mxu0 0
        %1568 = vmatpush1.bf16.msra.mxu0 0
        %1569 = vmatprep.subr.bf16.mxu0 0
        %1570 = vmatpush1.bf16.msra.mxu0 0
        %1571 = vmatprep.subr.bf16.mxu0 0
        %1572 = vmatpush1.bf16.msra.mxu0 0
        %1573 = vmatprep.subr.bf16.mxu0 0
        %1574 = vmatpush1.bf16.msra.mxu0 0
        %1575 = vmatprep.subr.bf16.mxu0 0
        %1576 = vmatpush1.bf16.msra.mxu0 0
        %1577 = vmatprep.subr.bf16.mxu0 0
        %1578 = vmatpush1.bf16.msra.mxu0 0
        %1579 = vmatprep.subr.bf16.mxu0 0
        %1580 = vmatpush1.bf16.msra.mxu0 0
        %1581 = vmatprep.subr.bf16.mxu0 0
        %1582 = vmatpush1.bf16.msra.mxu0 0
        %1583 = vmatprep.mubr.bf16.mxu0 0
        %1584 = vmatmul.mubr.bf16.gmra.mrb[0].mxu0 %v1509
        %v1585 = vpop.f32.mrb[0].mxu0
        %v1586 = vadd.f32 0.0, %v1585
        %v1587 = vpop.f32.mrb[0].mxu0
        %v1588 = vadd.f32 0.0, %v1587
        %v1589 = vpop.f32.mrb[0].mxu0
        %v1590 = vpop.f32.mrb[0].mxu0
        %1591 = vdwg.mxu0
        %v1592 = vadd.f32 %v908, %v1545
        %v1593 = vadd.f32 %v910, %v1547
        %v1594 = vadd.f32 %v971, %v1586
        %v1595 = vadd.f32 %v973, %v1588
        %v1596 = vxor.u32 %v1592, 2147483648
        %v1597 = vxor.u32 %v1593, 2147483648
        %v1598 = vxor.u32 %v1595, 2147483648
        %v1599 = vmul.f32 %v1596, 1.442695
        %v1600 = vpow.pop %v1599
        %v1601 = vmul.f32 %v1597, 1.442695
        %v1602 = vpow.pop %v1601
        %v1603 = vmul.f32 %v1598, 1.442695
        %v1604 = vpow.pop %v1603
        %v1605 = vadd.f32 %v1600, 1.0
        %v1606 = vadd.f32 %v1602, 1.0
        %v1607 = vadd.f32 %v1604, 1.0
        %v1608 = vrcp.pop %v1605
        %v1609 = vmul.f32 1.0, %v1608
        %v1610 = vrcp.pop %v1606
        %v1611 = vmul.f32 1.0, %v1610
        %v1612 = vrcp.pop %v1607
        %v1613 = vmul.f32 1.0, %v1612
        %v1614 = vtanh.pop %v1594
        %v1615 = vmul.f32 %v1611, %v1506
        %v1616 = vmul.f32 %v1609, %v1614
        %v1617 = vadd.f32 %v1615, %v1616
        %v1618 = vtanh.pop %v1617
        %v1619 = vmul.f32 %v1613, %v1618
        %v1620 = vpack.c.bf16 %v1619, %v1619
        %1621 = vmatprep.subr.bf16.mxu0 %v1114
        %1622 = vmatpush1.bf16.msra.mxu0 %v1113
        %1623 = vmatprep.subr.bf16.mxu0 %v1118
        %1624 = vmatpush1.bf16.msra.mxu0 %v1117
        %1625 = vmatprep.subr.bf16.mxu0 %v1122
        %1626 = vmatpush1.bf16.msra.mxu0 %v1121
        %1627 = vmatprep.subr.bf16.mxu0 %v1126
        %1628 = vmatpush1.bf16.msra.mxu0 %v1125
        %1629 = vmatprep.subr.bf16.mxu0 %v1130
        %1630 = vmatpush1.bf16.msra.mxu0 %v1129
        %1631 = vmatprep.subr.bf16.mxu0 %v1134
        %1632 = vmatpush1.bf16.msra.mxu0 %v1133
        %1633 = vmatprep.subr.bf16.mxu0 %v1138
        %1634 = vmatpush1.bf16.msra.mxu0 %v1137
        %1635 = vmatprep.subr.bf16.mxu0 %v1142
        %1636 = vmatpush1.bf16.msra.mxu0 %v1141
        %1637 = vmatprep.subr.bf16.mxu0 0
        %1638 = vmatpush1.bf16.msra.mxu0 0
        %1639 = vmatprep.subr.bf16.mxu0 0
        %1640 = vmatpush1.bf16.msra.mxu0 0
        %1641 = vmatprep.subr.bf16.mxu0 0
        %1642 = vmatpush1.bf16.msra.mxu0 0
        %1643 = vmatprep.subr.bf16.mxu0 0
        %1644 = vmatpush1.bf16.msra.mxu0 0
        %1645 = vmatprep.subr.bf16.mxu0 0
        %1646 = vmatpush1.bf16.msra.mxu0 0
        %1647 = vmatprep.subr.bf16.mxu0 0
        %1648 = vmatpush1.bf16.msra.mxu0 0
        %1649 = vmatprep.subr.bf16.mxu0 0
        %1650 = vmatpush1.bf16.msra.mxu0 0
        %1651 = vmatprep.subr.bf16.mxu0 0
        %1652 = vmatpush1.bf16.msra.mxu0 0
        %1653 = vmatprep.mubr.bf16.mxu0 0
        %1654 = vmatmul.mubr.bf16.gmra.mrb[0].mxu0 %v1620
        %v1655 = vpop.f32.mrb[0].mxu0
        %v1656 = vadd.f32 0.0, %v1655
        %v1657 = vpop.f32.mrb[0].mxu0
        %v1658 = vadd.f32 0.0, %v1657
        %v1659 = vpop.f32.mrb[0].mxu0
        %v1660 = vpop.f32.mrb[0].mxu0
        %1661 = vdwg.mxu0
        %1662 = vmatprep.subr.bf16.mxu0 %v1116
        %1663 = vmatpush1.bf16.msra.mxu0 %v1115
        %1664 = vmatprep.subr.bf16.mxu0 %v1120
        %1665 = vmatpush1.bf16.msra.mxu0 %v1119
        %1666 = vmatprep.subr.bf16.mxu0 %v1124
        %1667 = vmatpush1.bf16.msra.mxu0 %v1123
        %1668 = vmatprep.subr.bf16.mxu0 %v1128
        %1669 = vmatpush1.bf16.msra.mxu0 %v1127
        %1670 = vmatprep.subr.bf16.mxu0 %v1132
        %1671 = vmatpush1.bf16.msra.mxu0 %v1131
        %1672 = vmatprep.subr.bf16.mxu0 %v1136
        %1673 = vmatpush1.bf16.msra.mxu0 %v1135
        %1674 = vmatprep.subr.bf16.mxu0 %v1140
        %1675 = vmatpush1.bf16.msra.mxu0 %v1139
        %1676 = vmatprep.subr.bf16.mxu0 %v1144
        %1677 = vmatpush1.bf16.msra.mxu0 %v1143
        %1678 = vmatprep.subr.bf16.mxu0 0
        %1679 = vmatpush1.bf16.msra.mxu0 0
        %1680 = vmatprep.subr.bf16.mxu0 0
        %1681 = vmatpush1.bf16.msra.mxu0 0
        %1682 = vmatprep.subr.bf16.mxu0 0
        %1683 = vmatpush1.bf16.msra.mxu0 0
        %1684 = vmatprep.subr.bf16.mxu0 0
        %1685 = vmatpush1.bf16.msra.mxu0 0
        %1686 = vmatprep.subr.bf16.mxu0 0
        %1687 = vmatpush1.bf16.msra.mxu0 0
        %1688 = vmatprep.subr.bf16.mxu0 0
        %1689 = vmatpush1.bf16.msra.mxu0 0
        %1690 = vmatprep.subr.bf16.mxu0 0
        %1691 = vmatpush1.bf16.msra.mxu0 0
        %1692 = vmatprep.subr.bf16.mxu0 0
        %1693 = vmatpush1.bf16.msra.mxu0 0
        %1694 = vmatprep.mubr.bf16.mxu0 0
        %1695 = vmatmul.mubr.bf16.gmra.mrb[0].mxu0 %v1620
        %v1696 = vpop.f32.mrb[0].mxu0
        %v1697 = vadd.f32 0.0, %v1696
        %v1698 = vpop.f32.mrb[0].mxu0
        %v1699 = vadd.f32 0.0, %v1698
        %v1700 = vpop.f32.mrb[0].mxu0
        %v1701 = vpop.f32.mrb[0].mxu0
        %1702 = vdwg.mxu0
        %v1703 = vadd.f32 %v914, %v1656
        %v1704 = vadd.f32 %v916, %v1658
        %v1705 = vadd.f32 %v977, %v1697
        %v1706 = vadd.f32 %v979, %v1699
        %v1707 = vxor.u32 %v1703, 2147483648
        %v1708 = vxor.u32 %v1704, 2147483648
        %v1709 = vxor.u32 %v1706, 2147483648
        %v1710 = vmul.f32 %v1707, 1.442695
        %v1711 = vpow.pop %v1710
        %v1712 = vmul.f32 %v1708, 1.442695
        %v1713 = vpow.pop %v1712
        %v1714 = vmul.f32 %v1709, 1.442695
        %v1715 = vpow.pop %v1714
        %v1716 = vadd.f32 %v1711, 1.0
        %v1717 = vadd.f32 %v1713, 1.0
        %v1718 = vadd.f32 %v1715, 1.0
        %v1719 = vrcp.pop %v1716
        %v1720 = vmul.f32 1.0, %v1719
        %v1721 = vrcp.pop %v1717
        %v1722 = vmul.f32 1.0, %v1721
        %v1723 = vrcp.pop %v1718
        %v1724 = vmul.f32 1.0, %v1723
        %v1725 = vtanh.pop %v1705
        %v1726 = vmul.f32 %v1722, %v1617
        %v1727 = vmul.f32 %v1720, %v1725
        %v1728 = vadd.f32 %v1726, %v1727
        %v1729 = vtanh.pop %v1728
        %v1730 = vmul.f32 %v1724, %v1729
        %v1731 = vpack.c.bf16 %v1730, %v1730
        %1732 = vmatprep.subr.bf16.mxu0 %v1114
        %1733 = vmatpush1.bf16.msra.mxu0 %v1113
        %1734 = vmatprep.subr.bf16.mxu0 %v1118
        %1735 = vmatpush1.bf16.msra.mxu0 %v1117
        %1736 = vmatprep.subr.bf16.mxu0 %v1122
        %1737 = vmatpush1.bf16.msra.mxu0 %v1121
        %1738 = vmatprep.subr.bf16.mxu0 %v1126
        %1739 = vmatpush1.bf16.msra.mxu0 %v1125
        %1740 = vmatprep.subr.bf16.mxu0 %v1130
        %1741 = vmatpush1.bf16.msra.mxu0 %v1129
        %1742 = vmatprep.subr.bf16.mxu0 %v1134
        %1743 = vmatpush1.bf16.msra.mxu0 %v1133
        %1744 = vmatprep.subr.bf16.mxu0 %v1138
        %1745 = vmatpush1.bf16.msra.mxu0 %v1137
        %1746 = vmatprep.subr.bf16.mxu0 %v1142
        %1747 = vmatpush1.bf16.msra.mxu0 %v1141
        %1748 = vmatprep.subr.bf16.mxu0 0
        %1749 = vmatpush1.bf16.msra.mxu0 0
        %1750 = vmatprep.subr.bf16.mxu0 0
        %1751 = vmatpush1.bf16.msra.mxu0 0
        %1752 = vmatprep.subr.bf16.mxu0 0
        %1753 = vmatpush1.bf16.msra.mxu0 0
        %1754 = vmatprep.subr.bf16.mxu0 0
        %1755 = vmatpush1.bf16.msra.mxu0 0
        %1756 = vmatprep.subr.bf16.mxu0 0
        %1757 = vmatpush1.bf16.msra.mxu0 0
        %1758 = vmatprep.subr.bf16.mxu0 0
        %1759 = vmatpush1.bf16.msra.mxu0 0
        %1760 = vmatprep.subr.bf16.mxu0 0
        %1761 = vmatpush1.bf16.msra.mxu0 0
        %1762 = vmatprep.subr.bf16.mxu0 0
        %1763 = vmatpush1.bf16.msra.mxu0 0
        %1764 = vmatprep.mubr.bf16.mxu0 0
        %1765 = vmatmul.mubr.bf16.gmra.mrb[0].mxu0 %v1731
        %v1766 = vpop.f32.mrb[0].mxu0
        %v1767 = vadd.f32 0.0, %v1766
        %v1768 = vpop.f32.mrb[0].mxu0
        %v1769 = vadd.f32 0.0, %v1768
        %v1770 = vpop.f32.mrb[0].mxu0
        %v1771 = vpop.f32.mrb[0].mxu0
        %1772 = vdwg.mxu0
        %1773 = vmatprep.subr.bf16.mxu0 %v1116
        %1774 = vmatpush1.bf16.msra.mxu0 %v1115
        %1775 = vmatprep.subr.bf16.mxu0 %v1120
        %1776 = vmatpush1.bf16.msra.mxu0 %v1119
        %1777 = vmatprep.subr.bf16.mxu0 %v1124
        %1778 = vmatpush1.bf16.msra.mxu0 %v1123
        %1779 = vmatprep.subr.bf16.mxu0 %v1128
        %1780 = vmatpush1.bf16.msra.mxu0 %v1127
        %1781 = vmatprep.subr.bf16.mxu0 %v1132
        %1782 = vmatpush1.bf16.msra.mxu0 %v1131
        %1783 = vmatprep.subr.bf16.mxu0 %v1136
        %1784 = vmatpush1.bf16.msra.mxu0 %v1135
        %1785 = vmatprep.subr.bf16.mxu0 %v1140
        %1786 = vmatpush1.bf16.msra.mxu0 %v1139
        %1787 = vmatprep.subr.bf16.mxu0 %v1144
        %1788 = vmatpush1.bf16.msra.mxu0 %v1143
        %1789 = vmatprep.subr.bf16.mxu0 0
        %1790 = vmatpush1.bf16.msra.mxu0 0
        %1791 = vmatprep.subr.bf16.mxu0 0
        %1792 = vmatpush1.bf16.msra.mxu0 0
        %1793 = vmatprep.subr.bf16.mxu0 0
        %1794 = vmatpush1.bf16.msra.mxu0 0
        %1795 = vmatprep.subr.bf16.mxu0 0
        %1796 = vmatpush1.bf16.msra.mxu0 0
        %1797 = vmatprep.subr.bf16.mxu0 0
        %1798 = vmatpush1.bf16.msra.mxu0 0
        %1799 = vmatprep.subr.bf16.mxu0 0
        %1800 = vmatpush1.bf16.msra.mxu0 0
        %1801 = vmatprep.subr.bf16.mxu0 0
        %1802 = vmatpush1.bf16.msra.mxu0 0
        %1803 = vmatprep.subr.bf16.mxu0 0
        %1804 = vmatpush1.bf16.msra.mxu0 0
        %1805 = vmatprep.mubr.bf16.mxu0 0
        %1806 = vmatmul.mubr.bf16.gmra.mrb[0].mxu0 %v1731
        %v1807 = vpop.f32.mrb[0].mxu0
        %v1808 = vadd.f32 0.0, %v1807
        %v1809 = vpop.f32.mrb[0].mxu0
        %v1810 = vadd.f32 0.0, %v1809
        %v1811 = vpop.f32.mrb[0].mxu0
        %v1812 = vpop.f32.mrb[0].mxu0
        %1813 = vdwg.mxu0
        %v1814 = vadd.f32 %v918, %v1767
        %v1815 = vadd.f32 %v920, %v1769
        %v1816 = vadd.f32 %v981, %v1808
        %v1817 = vadd.f32 %v983, %v1810
        %v1818 = vxor.u32 %v1814, 2147483648
        %v1819 = vxor.u32 %v1815, 2147483648
        %v1820 = vxor.u32 %v1817, 2147483648
        %v1821 = vmul.f32 %v1818, 1.442695
        %v1822 = vpow.pop %v1821
        %v1823 = vmul.f32 %v1819, 1.442695
        %v1824 = vpow.pop %v1823
        %v1825 = vmul.f32 %v1820, 1.442695
        %v1826 = vpow.pop %v1825
        %v1827 = vadd.f32 %v1822, 1.0
        %v1828 = vadd.f32 %v1824, 1.0
        %v1829 = vadd.f32 %v1826, 1.0
        %v1830 = vrcp.pop %v1827
        %v1831 = vmul.f32 1.0, %v1830
        %v1832 = vrcp.pop %v1828
        %v1833 = vmul.f32 1.0, %v1832
        %v1834 = vrcp.pop %v1829
        %v1835 = vmul.f32 1.0, %v1834
        %v1836 = vtanh.pop %v1816
        %v1837 = vmul.f32 %v1833, %v1728
        %v1838 = vmul.f32 %v1831, %v1836
        %v1839 = vadd.f32 %v1837, %v1838
        %v1840 = vtanh.pop %v1839
        %v1841 = vmul.f32 %v1835, %v1840
        %v1842 = vpack.c.bf16 %v1841, %v1841
        %v1843 = vld [vmem:[#allocation8] sm:$0xf]
        %v1844 = vld [vmem:[#allocation8 + $0x4] sm:$0xf]
        %v1845 = vld [vmem:[#allocation8 + $0x8] sm:$0xf]
        %v1846 = vld [vmem:[#allocation8 + $0xc] sm:$0xf]
        %v1847 = vld [vmem:[#allocation8 + $0x10] sm:$0xf]
        %v1848 = vld [vmem:[#allocation8 + $0x14] sm:$0xf]
        %v1849 = vld [vmem:[#allocation8 + $0x18] sm:$0xf]
        %v1850 = vld [vmem:[#allocation8 + $0x1c] sm:$0xf]
        %v1851 = vld [vmem:[#allocation8 + $0x20] sm:$0xf]
        %v1852 = vld [vmem:[#allocation8 + $0x24] sm:$0xf]
        %v1853 = vld [vmem:[#allocation8 + $0x28] sm:$0xf]
        %v1854 = vld [vmem:[#allocation8 + $0x2c] sm:$0xf]
        %v1855 = vld [vmem:[#allocation8 + $0x30] sm:$0xf]
        %v1856 = vld [vmem:[#allocation8 + $0x34] sm:$0xf]
        %v1857 = vld [vmem:[#allocation8 + $0x38] sm:$0xf]
        %v1858 = vld [vmem:[#allocation8 + $0x3c] sm:$0xf]
        %v1859 = vld [vmem:[%s7] sm:$0x1]
        %v1861 = vlaneseq
        %v1862 = vshrl.u32 %v1861, 7
        %v1863 = vsub.s32 0, %v1862
        %v1864 = vrot.slane %v1859, %v1863
        %v1882 = vunpack.c.l.b16 %v1843
        %v1883 = vunpack.c.l.b16 %v1844
        %v1884 = vunpack.c.l.b16 %v1845
        %v1885 = vunpack.c.l.b16 %v1846
        %v1886 = vunpack.c.l.b16 %v1847
        %v1887 = vunpack.c.l.b16 %v1848
        %v1888 = vunpack.c.l.b16 %v1849
        %v1889 = vunpack.c.l.b16 %v1850
        %v1890 = vunpack.c.l.b16 %v1851
        %v1891 = vunpack.c.l.b16 %v1852
        %v1892 = vunpack.c.l.b16 %v1853
        %v1893 = vunpack.c.l.b16 %v1854
        %v1894 = vunpack.c.l.b16 %v1855
        %v1895 = vunpack.c.l.b16 %v1856
        %v1896 = vunpack.c.l.b16 %v1857
        %v1897 = vunpack.c.l.b16 %v1858
        %v1898 = vpack.c.b16 %v1883, %v1882
        %v1899 = vpack.c.b16 %v1885, %v1884
        %v1900 = vpack.c.b16 %v1887, %v1886
        %v1901 = vpack.c.b16 %v1889, %v1888
        %v1902 = vpack.c.b16 %v1891, %v1890
        %v1903 = vpack.c.b16 %v1893, %v1892
        %v1904 = vpack.c.b16 %v1895, %v1894
        %v1905 = vpack.c.b16 %v1897, %v1896
        %1914 = vmatprep.subr.bf16.mxu0 0
        %1915 = vmatpush1.bf16.msra.mxu0 %v1898
        %1916 = vmatprep.subr.bf16.mxu0 0
        %1917 = vmatpush1.bf16.msra.mxu0 %v1899
        %1918 = vmatprep.subr.bf16.mxu0 0
        %1919 = vmatpush1.bf16.msra.mxu0 %v1900
        %1920 = vmatprep.subr.bf16.mxu0 0
        %1921 = vmatpush1.bf16.msra.mxu0 %v1901
        %1922 = vmatprep.subr.bf16.mxu0 0
        %1923 = vmatpush1.bf16.msra.mxu0 %v1902
        %1924 = vmatprep.subr.bf16.mxu0 0
        %1925 = vmatpush1.bf16.msra.mxu0 %v1903
        %1926 = vmatprep.subr.bf16.mxu0 0
        %1927 = vmatpush1.bf16.msra.mxu0 %v1904
        %1928 = vmatprep.subr.bf16.mxu0 0
        %1929 = vmatpush1.bf16.msra.mxu0 %v1905
        %1930 = vmatprep.subr.bf16.mxu0 0
        %1931 = vmatpush1.bf16.msra.mxu0 0
        %1932 = vmatprep.subr.bf16.mxu0 0
        %1933 = vmatpush1.bf16.msra.mxu0 0
        %1934 = vmatprep.subr.bf16.mxu0 0
        %1935 = vmatpush1.bf16.msra.mxu0 0
        %1936 = vmatprep.subr.bf16.mxu0 0
        %1937 = vmatpush1.bf16.msra.mxu0 0
        %1938 = vmatprep.subr.bf16.mxu0 0
        %1939 = vmatpush1.bf16.msra.mxu0 0
        %1940 = vmatprep.subr.bf16.mxu0 0
        %1941 = vmatpush1.bf16.msra.mxu0 0
        %1942 = vmatprep.subr.bf16.mxu0 0
        %1943 = vmatpush1.bf16.msra.mxu0 0
        %1944 = vmatprep.subr.bf16.mxu0 0
        %1945 = vmatpush1.bf16.msra.mxu0 0
        %1946 = vmatprep.mubr.bf16.mxu0 0
        %1947 = vmatmul.mubr.bf16.gmra.mrb[0].mxu0 %v1842
        %v1948 = vpop.f32.mrb[0].mxu0
        %v1949 = vadd.f32 %v1864, %v1948
        %v1950 = vpop.f32.mrb[0].mxu0
        %v1951 = vpop.f32.mrb[0].mxu0
        %v1952 = vpop.f32.mrb[0].mxu0
        %1953 = vdwg.mxu0
        %1954 = vmax.xlane.f32.xlu0 %v1949
        %v1955 = vpop.xlane.xlu0 %1954
        %v1956 = vsub.f32 %v1949, %v1955
        %v1957 = vmul.f32 %v1956, 1.442695
        %v1958 = vpow.pop %v1957
        %1959 = vadd.xlane.f32.xlu0 %v1958
        %v1960 = vpop.xlane.xlu0 %1959
        %v1961 = vlog2.pop %v1960
        %v1962 = vmul.f32 %v1961, 0.6931472
        %v1963 = vsub.f32 %v1956, %v1962
        %1964 = vst [vmem:[%s355] sm:$0xff] %v1963
        %s1965 = sand.u32 %s206, 1
        %s1966 = scalar_lea.sflag [#allocation4], %s1965
        %s1967 = sand.u32 %s206, 1
        %s1968 = smul.addr %s1967, 8
        %s1969 = scalar_lea.vmem [#allocation10], %s1968
        // Predicated region
        $region69: #{tpu_custom_call.1} parent=51 // pred_check
          %p1970 = pneg %p216
        $region70: #{tpu_custom_call.1} parent=51 // pred_check_branch
          %1972 = sbr.rel (%p1970) target = $region72
        $region71: #{tpu_custom_call.1} parent=51 // pred_region
          %s1974 = ssub.s32 128, 128
          %1975 = vsyncadd %s1966, %s1974
          %s1976 = smul.addr %s25, 128
          %s1977 = scalar_lea.hbm %s8, %s1976
          %s1979 = sshll.u32 %s1969, 4
          %s1980 = int_to_ptr.vmem [resolvable:$true] %s1979
          %1982 = dma.vmem_to_hbm [thread:$0]  %s1980, 128, %s1977, %s1966
        $region72: #{tpu_custom_call.1} parent=51 // pred_fallthru
          _
      $region52: #{tpu_custom_call.1} parent=5 // pred_fallthru
        _
      %p1983 = scmp.le.s32.totalorder 2, %s20
      // Predicated region
      $region73: #{tpu_custom_call.1} parent=5 // pred_check
        %p1984 = pneg %p1983
      $region74: #{tpu_custom_call.1} parent=5 // pred_check_branch
        %1986 = sbr.rel (%p1984) target = $region76
      $region75: #{tpu_custom_call.1} parent=5 // pred_region
        %s1987 = ssub.s32 %s20, 2
        // Predicated region
        $region77: #{tpu_custom_call.1} parent=75 // pred_check
          %p1988 = pneg %p222
        $region78: #{tpu_custom_call.1} parent=75 // pred_check_branch
          %1990 = sbr.rel (%p1988) target = $region80
        $region79: #{tpu_custom_call.1} parent=75 // pred_region
          %s1991 = sand.u32 %s207, 1
          %s1992 = scalar_lea.sflag [#allocation4], %s1991
          %s1993 = sand.u32 %s207, 1
          %s1994 = smul.addr %s1993, 8
          %s1995 = scalar_lea.vmem [#allocation10], %s1994
          %1996 = dma.done %s1992, 128
        $region80: #{tpu_custom_call.1} parent=75 // pred_fallthru
          _
      $region76: #{tpu_custom_call.1} parent=5 // pred_fallthru
        _
    $region6: #{tpu_custom_call.1} parent=1 // loop_footer
      %s24 = sadd.s32 1, %s20
    $region7: #{tpu_custom_call.1} parent=1 // loop_footer_branch
      %19 = sbr.rel target = $region3
    $region8: #{tpu_custom_call.1} parent=1 // loop_exit
      _
    %1997 = vsyncpa [#allocation3], 1
    %s1998 = scalar_lea.sflag [#allocation3], 1
    %1999 = vsyncpa %s1998, 1
    %2000 = vsyncpa [#allocation6], 1
    %2001 = vsyncpa [#allocation9], 1
    %2002 = vsyncpa [#allocation4], 1
    %s2003 = scalar_lea.sflag [#allocation4], 1
    %2004 = vsyncpa %s2003, 1

</llo_original>
